<compile_context>
chip_gen: v7x
topology: tpu7x:2x2x1
jax: 0.10.0
libtpu: 0.0.40
codegen_flags: <defaults>
</compile_context>

<pallas_src>
import jax
import jax.numpy as jnp
import numpy as np
from jax import lax
from jax.experimental import pallas as pl
from jax.experimental.pallas import tpu as pltpu

EPS = 1e-5


# ----------------------------------------------------------------------------
# In-kernel helper: depthwise 3x3, stride 2, pad 1 conv on parity slabs.
#   slab[p*2+q][i, j, c] == x[2i + p, 2j + q, c]   (p = row parity, q = col parity)
#   w: (3, 3, C) per-channel taps (BN scale folded in);  b: (1, C) bias (BN shift).
# Only contiguous slices / concats / elementwise VPU ops — no strided access.
# With even H, W the right/bottom taps never touch padding, so only a zero top
# row and zero left column are needed.
# ----------------------------------------------------------------------------
def _dw3x3_s2(ee, eo, oe, oo, w, b):
    Ho, Wo, C = ee.shape
    zrow = jnp.zeros((1, Wo, C), ee.dtype)
    zcol = jnp.zeros((Ho, 1, C), ee.dtype)

    def up(a):      # a[i-1, j]  (zero row at i == 0)  -> top padding
        return jnp.concatenate([zrow, a[:-1, :, :]], axis=0)

    def left(a):    # a[i, j-1]  (zero col at j == 0)  -> left padding
        return jnp.concatenate([zcol, a[:, :-1, :]], axis=1)

    oo_l = left(oo)                    # reused by taps (0,0) and (2,0)
    acc = (up(oo_l) * w[0, 0]          # (0,0): x[2i-1, 2j-1]
           + up(oe) * w[0, 1]          # (0,1): x[2i-1, 2j  ]
           + up(oo) * w[0, 2]          # (0,2): x[2i-1, 2j+1]
           + left(eo) * w[1, 0]        # (1,0): x[2i,   2j-1]
           + ee * w[1, 1]              # (1,1): x[2i,   2j  ]
           + eo * w[1, 2]              # (1,2): x[2i,   2j+1]
           + oo_l * w[2, 0]            # (2,0): x[2i+1, 2j-1]
           + oe * w[2, 1]              # (2,1): x[2i+1, 2j  ]
           + oo * w[2, 2])             # (2,2): x[2i+1, 2j+1]
    return acc + b


# ----------------------------------------------------------------------------
# Fused DownBlock kernel: one grid step == one batch element.
# ----------------------------------------------------------------------------
def _downblock_kernel(x_ref, w1_ref, b1_ref, w3_ref, b3_ref, w4_ref, b4_ref,
                      w2i_ref, w5i_ref, bi_ref, o_ref):
    xs = x_ref[...]                      # (1, 4, Ho, Wo, Cin) parity slabs
    _, _, Ho, Wo, Cin = xs.shape
    mid = w3_ref.shape[1]

    ee, eo, oe, oo = xs[0, 0], xs[0, 1], xs[0, 2], xs[0, 3]

    # Branch 1: depthwise conv1 (s2, pad 1) + BN1 (folded), no ReLU.
    t1 = _dw3x3_s2(ee, eo, oe, oo, w1_ref[...], b1_ref[...])          # (Ho, Wo, Cin)

    # Branch 2: 1x1 conv3 + BN3 + ReLU at full resolution (a 1x1 conv is pointwise,
    # so it commutes with the space-to-depth layout), then depthwise conv4 + BN4.
    # The leading-dim flatten keeps Cin on the lane axis -> layout-preserving.
    xflat = xs.reshape(4 * Ho * Wo, Cin)
    t2 = jnp.dot(xflat, w3_ref[...], preferred_element_type=jnp.float32) + b3_ref[...]
    t2 = jnp.maximum(t2, 0.0).reshape(4, Ho, Wo, mid)
    t3 = _dw3x3_s2(t2[0], t2[1], t2[2], t2[3], w4_ref[...], b4_ref[...])  # (Ho,Wo,mid)

    # Final 1x1 convs (conv2 on branch 1, conv5 on branch 2) with BN2/BN5 folded and
    # their output columns interleaved -> the groups=2 channel shuffle is free.
    y = (jnp.dot(t1.reshape(Ho * Wo, Cin), w2i_ref[...],
                 preferred_element_type=jnp.float32)
         + jnp.dot(t3.reshape(Ho * Wo, mid), w5i_ref[...],
                   preferred_element_type=jnp.float32)
         + bi_ref[...])
    y = jnp.maximum(y, 0.0)
    o_ref[...] = y[None].astype(o_ref.dtype)


# ----------------------------------------------------------------------------
# Host-side wrapper (NCHW in / NCHW out, matching the PyTorch module).
# ----------------------------------------------------------------------------
def fold_bn(gamma, beta, mean, var):
    scale = gamma / jnp.sqrt(var + EPS)
    shift = beta - mean * scale
    return scale, shift


def downblock_forward(x_nchw, p):
    N, Cin, H, W = x_nchw.shape
    assert H % 2 == 0 and W % 2 == 0, "even spatial dims required (stride 2, pad 1)"
    mid = p["w2"].shape[1]
    Cout = 2 * mid
    Ho, Wo = H // 2, W // 2

    # ---- fold BN into weights / biases (tiny parameter-sized host-side work) ----
    s1, sh1 = p["bn1"]; s2, sh2 = p["bn2"]; s3, sh3 = p["bn3"]
    s4, sh4 = p["bn4"]; s5, sh5 = p["bn5"]
    w1f = p["w1"] * s1[None, None, :]
    w3f = p["w3"] * s3[None, :]
    w4f = p["w4"] * s4[None, None, :]
    # Interleave conv2 (even output channels) / conv5 (odd) => channel shuffle folded.
    w2i = jnp.zeros((Cin, Cout), jnp.float32).at[:, 0::2].set(p["w2"] * s2[None, :])
    w5i = jnp.zeros((mid, Cout), jnp.float32).at[:, 1::2].set(p["w5"] * s5[None, :])
    bi = jnp.zeros((Cout,), jnp.float32).at[0::2].set(sh2).at[1::2].set(sh5)

    # ---- single layout op: NCHW -> channels-last parity slabs (space-to-depth) ----
    # xs[n, 2p+q, i, j, c] == x[n, c, 2i+p, 2j+q]
    xs = (x_nchw.reshape(N, Cin, Ho, 2, Wo, 2)
          .transpose(0, 3, 5, 2, 4, 1)
          .reshape(N, 4, Ho, Wo, Cin))

    flops = 2 * N * (Ho * Wo * Cin * 9 + H * W * Cin * mid
                     + Ho * Wo * mid * 9 + Ho * Wo * (Cin + mid) * Cout)
    bytes_accessed = 4 * (xs.size + w1f.size + w3f.size + w4f.size + w2i.size
                          + w5i.size + Cin + 2 * mid + Cout + N * Ho * Wo * Cout)

    out = pl.pallas_call(
        _downblock_kernel,
        out_shape=jax.ShapeDtypeStruct((N, Ho * Wo, Cout), jnp.float32),
        grid=(N,),
        in_specs=[
            pl.BlockSpec((1, 4, Ho, Wo, Cin), lambda n: (n, 0, 0, 0, 0)),
            pl.BlockSpec((3, 3, Cin), lambda n: (0, 0, 0)),
            pl.BlockSpec((1, Cin), lambda n: (0, 0)),
            pl.BlockSpec((Cin, mid), lambda n: (0, 0)),
            pl.BlockSpec((1, mid), lambda n: (0, 0)),
            pl.BlockSpec((3, 3, mid), lambda n: (0, 0, 0)),
            pl.BlockSpec((1, mid), lambda n: (0, 0)),
            pl.BlockSpec((Cin, Cout), lambda n: (0, 0)),
            pl.BlockSpec((mid, Cout), lambda n: (0, 0)),
            pl.BlockSpec((1, Cout), lambda n: (0, 0)),
        ],
        out_specs=pl.BlockSpec((1, Ho * Wo, Cout), lambda n: (n, 0, 0)),
        compiler_params=pltpu.CompilerParams(dimension_semantics=("parallel",)),
        cost_estimate=pl.CostEstimate(flops=flops, transcendentals=0,
                                      bytes_accessed=bytes_accessed),
    )(xs, w1f, sh1.reshape(1, -1), w3f, sh3.reshape(1, -1),
      w4f, sh4.reshape(1, -1), w2i, w5i, bi.reshape(1, -1))

    # (N, Ho*Wo, Cout) is already channel-shuffled -> single transpose back to NCHW.
    return out.reshape(N, Ho, Wo, Cout).transpose(0, 3, 1, 2)


# ----------------------------------------------------------------------------
# Parameters (deterministic, synthetic)
# ----------------------------------------------------------------------------
def init_params(key, cin, cout):
    mid = cout // 2
    ks = jax.random.split(key, 20)

    def bn(kk, c):
        k1, k2, k3, k4 = jax.random.split(kk, 4)
        gamma = jax.random.uniform(k1, (c,), jnp.float32, 0.5, 1.5)
        beta = 0.1 * jax.random.normal(k2, (c,), jnp.float32)
        mean = 0.1 * jax.random.normal(k3, (c,), jnp.float32)
        var = jax.random.uniform(k4, (c,), jnp.float32, 0.5, 1.5)
        return fold_bn(gamma, beta, mean, var)

    p = {}
    p["w1"] = 0.3 * jax.random.normal(ks[0], (3, 3, cin), jnp.float32)   # dw conv1
    p["bn1"] = bn(ks[1], cin)
    p["w2"] = 0.3 * jax.random.normal(ks[2], (cin, mid), jnp.float32)    # 1x1 conv2
    p["bn2"] = bn(ks[3], mid)
    p["w3"] = 0.3 * jax.random.normal(ks[4], (cin, mid), jnp.float32)    # 1x1 conv3
    p["bn3"] = bn(ks[5], mid)
    p["w4"] = 0.3 * jax.random.normal(ks[6], (3, 3, mid), jnp.float32)   # dw conv4
    p["bn4"] = bn(ks[7], mid)
    p["w5"] = 0.3 * jax.random.normal(ks[8], (mid, mid), jnp.float32)    # 1x1 conv5
    p["bn5"] = bn(ks[9], mid)
    return p


# ----------------------------------------------------------------------------
# Pure-JAX reference (mirrors the PyTorch module, eval-mode BN) for validation
# ----------------------------------------------------------------------------
def _ref_dw(x_nchw, w_hwc, scale, shift):
    C = x_nchw.shape[1]
    w = jnp.transpose(w_hwc, (2, 0, 1))[:, None, :, :]  # (C,1,3,3)
    y = lax.conv_general_dilated(
        x_nchw, w, window_strides=(2, 2), padding=((1, 1), (1, 1)),
        feature_group_count=C, dimension_numbers=("NCHW", "OIHW", "NCHW"))
    return y * scale[None, :, None, None] + shift[None, :, None, None]


def _ref_pw(x_nchw, w_io, scale, shift):
    y = jnp.einsum("nihw,io->nohw", x_nchw, w_io)
    return y * scale[None, :, None, None] + shift[None, :, None, None]


def downblock_reference(x_nchw, p):
    o1 = _ref_dw(x_nchw, p["w1"], *p["bn1"])
    o1 = jax.nn.relu(_ref_pw(o1, p["w2"], *p["bn2"]))
    o2 = jax.nn.relu(_ref_pw(x_nchw, p["w3"], *p["bn3"]))
    o2 = _ref_dw(o2, p["w4"], *p["bn4"])
    o2 = jax.nn.relu(_ref_pw(o2, p["w5"], *p["bn5"]))
    out = jnp.concatenate([o1, o2], axis=1)
    N, C, H, W = out.shape
    g = 2
    return out.reshape(N, g, C // g, H, W).transpose(0, 2, 1, 3, 4).reshape(N, C, H, W)


# ----------------------------------------------------------------------------
if __name__ == "__main__":
    N, Cin, H, W = 2, 8, 16, 16
    Cout = 16

    key = jax.random.PRNGKey(0)
    kx, kp = jax.random.split(key)
    x = jax.random.normal(kx, (N, Cin, H, W), jnp.float32)
    params = init_params(kp, Cin, Cout)

    fwd = jax.jit(downblock_forward)
    out = jax.block_until_ready(fwd(x, params))
    ref = jax.block_until_ready(downblock_reference(x, params))

    assert out.shape == (N, Cout, H // 2, W // 2), out.shape
    np.testing.assert_allclose(np.asarray(out), np.asarray(ref), rtol=1e-4, atol=1e-4)
    print("KERNEL_OK")
</pallas_src>

<mosaic_0001>
module attributes {stable_mosaic.version = 11 : i64} {
  func.func @_downblock_kernel(%arg0: i32, %arg1: memref<1x4x8x8x8xf32, #tpu.memory_space<vmem>>, %arg2: memref<3x3x8xf32, #tpu.memory_space<vmem>>, %arg3: memref<1x8xf32, #tpu.memory_space<vmem>>, %arg4: memref<8x8xf32, #tpu.memory_space<vmem>>, %arg5: memref<1x8xf32, #tpu.memory_space<vmem>>, %arg6: memref<3x3x8xf32, #tpu.memory_space<vmem>>, %arg7: memref<1x8xf32, #tpu.memory_space<vmem>>, %arg8: memref<8x16xf32, #tpu.memory_space<vmem>>, %arg9: memref<8x16xf32, #tpu.memory_space<vmem>>, %arg10: memref<1x16xf32, #tpu.memory_space<vmem>>, %arg11: memref<1x64x16xf32, #tpu.memory_space<vmem>>) attributes {dimension_semantics = [#tpu.dimension_semantics<parallel>], iteration_bounds = array<i64: 2>, scalar_prefetch = 0 : i64, scratch_operands = 0 : i64, tpu.core_type = #tpu.core_type<tc>, window_params = [{transform_indices = @transform_0, window_bounds = array<i64: 1, 4, 8, 8, 8>}, {pipeline_mode = #tpu.pipeline_mode<synchronous>, transform_indices = @transform_1, window_bounds = array<i64: 3, 3, 8>}, {pipeline_mode = #tpu.pipeline_mode<synchronous>, transform_indices = @transform_2, window_bounds = array<i64: 1, 8>}, {pipeline_mode = #tpu.pipeline_mode<synchronous>, transform_indices = @transform_3, window_bounds = array<i64: 8, 8>}, {pipeline_mode = #tpu.pipeline_mode<synchronous>, transform_indices = @transform_4, window_bounds = array<i64: 1, 8>}, {pipeline_mode = #tpu.pipeline_mode<synchronous>, transform_indices = @transform_5, window_bounds = array<i64: 3, 3, 8>}, {pipeline_mode = #tpu.pipeline_mode<synchronous>, transform_indices = @transform_6, window_bounds = array<i64: 1, 8>}, {pipeline_mode = #tpu.pipeline_mode<synchronous>, transform_indices = @transform_7, window_bounds = array<i64: 8, 16>}, {pipeline_mode = #tpu.pipeline_mode<synchronous>, transform_indices = @transform_8, window_bounds = array<i64: 8, 16>}, {pipeline_mode = #tpu.pipeline_mode<synchronous>, transform_indices = @transform_9, window_bounds = array<i64: 1, 16>}, {transform_indices = @transform_10, window_bounds = array<i64: 1, 64, 16>}]} {
    %c0 = arith.constant 0 : index
    %c0_0 = arith.constant 0 : index
    %c0_1 = arith.constant 0 : index
    %c0_2 = arith.constant 0 : index
    %c0_3 = arith.constant 0 : index
    %0 = vector.load %arg1[%c0, %c0_0, %c0_1, %c0_2, %c0_3] : memref<1x4x8x8x8xf32, #tpu.memory_space<vmem>>, vector<1x4x8x8x8xf32>
    %1 = vector.extract_strided_slice %0 {offsets = [0, 0, 0, 0, 0], sizes = [1, 1, 8, 8, 8], strides = [1, 1, 1, 1, 1]} : vector<1x4x8x8x8xf32> to vector<1x1x8x8x8xf32>
    %2 = vector.shape_cast %1 : vector<1x1x8x8x8xf32> to vector<8x8x8xf32>
    %3 = vector.extract_strided_slice %0 {offsets = [0, 1, 0, 0, 0], sizes = [1, 1, 8, 8, 8], strides = [1, 1, 1, 1, 1]} : vector<1x4x8x8x8xf32> to vector<1x1x8x8x8xf32>
    %4 = vector.shape_cast %3 : vector<1x1x8x8x8xf32> to vector<8x8x8xf32>
    %5 = vector.extract_strided_slice %0 {offsets = [0, 2, 0, 0, 0], sizes = [1, 1, 8, 8, 8], strides = [1, 1, 1, 1, 1]} : vector<1x4x8x8x8xf32> to vector<1x1x8x8x8xf32>
    %6 = vector.shape_cast %5 : vector<1x1x8x8x8xf32> to vector<8x8x8xf32>
    %7 = vector.extract_strided_slice %0 {offsets = [0, 3, 0, 0, 0], sizes = [1, 1, 8, 8, 8], strides = [1, 1, 1, 1, 1]} : vector<1x4x8x8x8xf32> to vector<1x1x8x8x8xf32>
    %8 = vector.shape_cast %7 : vector<1x1x8x8x8xf32> to vector<8x8x8xf32>
    %c0_4 = arith.constant 0 : index
    %c0_5 = arith.constant 0 : index
    %c0_6 = arith.constant 0 : index
    %9 = vector.load %arg2[%c0_4, %c0_5, %c0_6] : memref<3x3x8xf32, #tpu.memory_space<vmem>>, vector<3x3x8xf32>
    %c0_7 = arith.constant 0 : index
    %c0_8 = arith.constant 0 : index
    %10 = vector.load %arg3[%c0_7, %c0_8] : memref<1x8xf32, #tpu.memory_space<vmem>>, vector<1x8xf32>
    %cst = arith.constant 0.000000e+00 : f32
    %11 = vector.broadcast %cst : f32 to vector<1x8x8xf32>
    %cst_9 = arith.constant 0.000000e+00 : f32
    %12 = vector.broadcast %cst_9 : f32 to vector<8x1x8xf32>
    %13 = vector.extract_strided_slice %8 {offsets = [0, 0, 0], sizes = [8, 7, 8], strides = [1, 1, 1]} : vector<8x8x8xf32> to vector<8x7x8xf32>
    %14 = tpu.concatenate %12, %13 in 1 : vector<8x1x8xf32>, vector<8x7x8xf32> -> vector<8x8x8xf32>
    %15 = vector.extract_strided_slice %14 {offsets = [0, 0, 0], sizes = [7, 8, 8], strides = [1, 1, 1]} : vector<8x8x8xf32> to vector<7x8x8xf32>
    %16 = tpu.concatenate %11, %15 in 0 : vector<1x8x8xf32>, vector<7x8x8xf32> -> vector<8x8x8xf32>
    %17 = vector.extract_strided_slice %9 {offsets = [0, 0, 0], sizes = [1, 1, 8], strides = [1, 1, 1]} : vector<3x3x8xf32> to vector<1x1x8xf32>
    %18 = vector.shape_cast %17 : vector<1x1x8xf32> to vector<8xf32>
    %19 = vector.shape_cast %18 : vector<8xf32> to vector<1x1x8xf32>
    %20 = vector.broadcast %19 : vector<1x1x8xf32> to vector<8x8x8xf32>
    %21 = arith.mulf %16, %20 : vector<8x8x8xf32>
    %22 = vector.extract_strided_slice %6 {offsets = [0, 0, 0], sizes = [7, 8, 8], strides = [1, 1, 1]} : vector<8x8x8xf32> to vector<7x8x8xf32>
    %23 = tpu.concatenate %11, %22 in 0 : vector<1x8x8xf32>, vector<7x8x8xf32> -> vector<8x8x8xf32>
    %24 = vector.extract_strided_slice %9 {offsets = [0, 1, 0], sizes = [1, 1, 8], strides = [1, 1, 1]} : vector<3x3x8xf32> to vector<1x1x8xf32>
    %25 = vector.shape_cast %24 : vector<1x1x8xf32> to vector<8xf32>
    %26 = vector.shape_cast %25 : vector<8xf32> to vector<1x1x8xf32>
    %27 = vector.broadcast %26 : vector<1x1x8xf32> to vector<8x8x8xf32>
    %28 = arith.mulf %23, %27 : vector<8x8x8xf32>
    %29 = arith.addf %21, %28 : vector<8x8x8xf32>
    %30 = vector.extract_strided_slice %8 {offsets = [0, 0, 0], sizes = [7, 8, 8], strides = [1, 1, 1]} : vector<8x8x8xf32> to vector<7x8x8xf32>
    %31 = tpu.concatenate %11, %30 in 0 : vector<1x8x8xf32>, vector<7x8x8xf32> -> vector<8x8x8xf32>
    %32 = vector.extract_strided_slice %9 {offsets = [0, 2, 0], sizes = [1, 1, 8], strides = [1, 1, 1]} : vector<3x3x8xf32> to vector<1x1x8xf32>
    %33 = vector.shape_cast %32 : vector<1x1x8xf32> to vector<8xf32>
    %34 = vector.shape_cast %33 : vector<8xf32> to vector<1x1x8xf32>
    %35 = vector.broadcast %34 : vector<1x1x8xf32> to vector<8x8x8xf32>
    %36 = arith.mulf %31, %35 : vector<8x8x8xf32>
    %37 = arith.addf %29, %36 : vector<8x8x8xf32>
    %38 = vector.extract_strided_slice %4 {offsets = [0, 0, 0], sizes = [8, 7, 8], strides = [1, 1, 1]} : vector<8x8x8xf32> to vector<8x7x8xf32>
    %39 = tpu.concatenate %12, %38 in 1 : vector<8x1x8xf32>, vector<8x7x8xf32> -> vector<8x8x8xf32>
    %40 = vector.extract_strided_slice %9 {offsets = [1, 0, 0], sizes = [1, 1, 8], strides = [1, 1, 1]} : vector<3x3x8xf32> to vector<1x1x8xf32>
    %41 = vector.shape_cast %40 : vector<1x1x8xf32> to vector<8xf32>
    %42 = vector.shape_cast %41 : vector<8xf32> to vector<1x1x8xf32>
    %43 = vector.broadcast %42 : vector<1x1x8xf32> to vector<8x8x8xf32>
    %44 = arith.mulf %39, %43 : vector<8x8x8xf32>
    %45 = arith.addf %37, %44 : vector<8x8x8xf32>
    %46 = vector.extract_strided_slice %9 {offsets = [1, 1, 0], sizes = [1, 1, 8], strides = [1, 1, 1]} : vector<3x3x8xf32> to vector<1x1x8xf32>
    %47 = vector.shape_cast %46 : vector<1x1x8xf32> to vector<8xf32>
    %48 = vector.shape_cast %47 : vector<8xf32> to vector<1x1x8xf32>
    %49 = vector.broadcast %48 : vector<1x1x8xf32> to vector<8x8x8xf32>
    %50 = arith.mulf %2, %49 : vector<8x8x8xf32>
    %51 = arith.addf %45, %50 : vector<8x8x8xf32>
    %52 = vector.extract_strided_slice %9 {offsets = [1, 2, 0], sizes = [1, 1, 8], strides = [1, 1, 1]} : vector<3x3x8xf32> to vector<1x1x8xf32>
    %53 = vector.shape_cast %52 : vector<1x1x8xf32> to vector<8xf32>
    %54 = vector.shape_cast %53 : vector<8xf32> to vector<1x1x8xf32>
    %55 = vector.broadcast %54 : vector<1x1x8xf32> to vector<8x8x8xf32>
    %56 = arith.mulf %4, %55 : vector<8x8x8xf32>
    %57 = arith.addf %51, %56 : vector<8x8x8xf32>
    %58 = vector.extract_strided_slice %9 {offsets = [2, 0, 0], sizes = [1, 1, 8], strides = [1, 1, 1]} : vector<3x3x8xf32> to vector<1x1x8xf32>
    %59 = vector.shape_cast %58 : vector<1x1x8xf32> to vector<8xf32>
    %60 = vector.shape_cast %59 : vector<8xf32> to vector<1x1x8xf32>
    %61 = vector.broadcast %60 : vector<1x1x8xf32> to vector<8x8x8xf32>
    %62 = arith.mulf %14, %61 : vector<8x8x8xf32>
    %63 = arith.addf %57, %62 : vector<8x8x8xf32>
    %64 = vector.extract_strided_slice %9 {offsets = [2, 1, 0], sizes = [1, 1, 8], strides = [1, 1, 1]} : vector<3x3x8xf32> to vector<1x1x8xf32>
    %65 = vector.shape_cast %64 : vector<1x1x8xf32> to vector<8xf32>
    %66 = vector.shape_cast %65 : vector<8xf32> to vector<1x1x8xf32>
    %67 = vector.broadcast %66 : vector<1x1x8xf32> to vector<8x8x8xf32>
    %68 = arith.mulf %6, %67 : vector<8x8x8xf32>
    %69 = arith.addf %63, %68 : vector<8x8x8xf32>
    %70 = vector.extract_strided_slice %9 {offsets = [2, 2, 0], sizes = [1, 1, 8], strides = [1, 1, 1]} : vector<3x3x8xf32> to vector<1x1x8xf32>
    %71 = vector.shape_cast %70 : vector<1x1x8xf32> to vector<8xf32>
    %72 = vector.shape_cast %71 : vector<8xf32> to vector<1x1x8xf32>
    %73 = vector.broadcast %72 : vector<1x1x8xf32> to vector<8x8x8xf32>
    %74 = arith.mulf %8, %73 : vector<8x8x8xf32>
    %75 = arith.addf %69, %74 : vector<8x8x8xf32>
    %76 = vector.shape_cast %10 : vector<1x8xf32> to vector<1x1x8xf32>
    %77 = vector.broadcast %76 : vector<1x1x8xf32> to vector<8x8x8xf32>
    %78 = arith.addf %75, %77 : vector<8x8x8xf32>
    %79 = vector.shape_cast %0 : vector<1x4x8x8x8xf32> to vector<256x8xf32>
    %c0_10 = arith.constant 0 : index
    %c0_11 = arith.constant 0 : index
    %80 = vector.load %arg4[%c0_10, %c0_11] : memref<8x8xf32, #tpu.memory_space<vmem>>, vector<8x8xf32>
    %cst_12 = arith.constant dense<0.000000e+00> : vector<256x8xf32>
    %81 = tpu.matmul %79, %80, %cst_12 {dimension_numbers = #tpu.dot_dimension_numbers<[1], [0], [0], [1], [0, 0, 1, 1], [], []>} : vector<256x8xf32>, vector<8x8xf32>, vector<256x8xf32> -> vector<256x8xf32>
    %c0_13 = arith.constant 0 : index
    %c0_14 = arith.constant 0 : index
    %82 = vector.load %arg5[%c0_13, %c0_14] : memref<1x8xf32, #tpu.memory_space<vmem>>, vector<1x8xf32>
    %83 = vector.broadcast %82 : vector<1x8xf32> to vector<256x8xf32>
    %84 = arith.addf %81, %83 : vector<256x8xf32>
    %cst_15 = arith.constant 0.000000e+00 : f32
    %85 = vector.broadcast %cst_15 : f32 to vector<256x8xf32>
    %86 = arith.maximumf %84, %85 : vector<256x8xf32>
    %87 = vector.shape_cast %86 : vector<256x8xf32> to vector<4x8x8x8xf32>
    %88 = vector.extract_strided_slice %87 {offsets = [0, 0, 0, 0], sizes = [1, 8, 8, 8], strides = [1, 1, 1, 1]} : vector<4x8x8x8xf32> to vector<1x8x8x8xf32>
    %89 = vector.shape_cast %88 : vector<1x8x8x8xf32> to vector<8x8x8xf32>
    %90 = vector.extract_strided_slice %87 {offsets = [1, 0, 0, 0], sizes = [1, 8, 8, 8], strides = [1, 1, 1, 1]} : vector<4x8x8x8xf32> to vector<1x8x8x8xf32>
    %91 = vector.shape_cast %90 : vector<1x8x8x8xf32> to vector<8x8x8xf32>
    %92 = vector.extract_strided_slice %87 {offsets = [2, 0, 0, 0], sizes = [1, 8, 8, 8], strides = [1, 1, 1, 1]} : vector<4x8x8x8xf32> to vector<1x8x8x8xf32>
    %93 = vector.shape_cast %92 : vector<1x8x8x8xf32> to vector<8x8x8xf32>
    %94 = vector.extract_strided_slice %87 {offsets = [3, 0, 0, 0], sizes = [1, 8, 8, 8], strides = [1, 1, 1, 1]} : vector<4x8x8x8xf32> to vector<1x8x8x8xf32>
    %95 = vector.shape_cast %94 : vector<1x8x8x8xf32> to vector<8x8x8xf32>
    %c0_16 = arith.constant 0 : index
    %c0_17 = arith.constant 0 : index
    %c0_18 = arith.constant 0 : index
    %96 = vector.load %arg6[%c0_16, %c0_17, %c0_18] : memref<3x3x8xf32, #tpu.memory_space<vmem>>, vector<3x3x8xf32>
    %c0_19 = arith.constant 0 : index
    %c0_20 = arith.constant 0 : index
    %97 = vector.load %arg7[%c0_19, %c0_20] : memref<1x8xf32, #tpu.memory_space<vmem>>, vector<1x8xf32>
    %cst_21 = arith.constant 0.000000e+00 : f32
    %98 = vector.broadcast %cst_21 : f32 to vector<1x8x8xf32>
    %cst_22 = arith.constant 0.000000e+00 : f32
    %99 = vector.broadcast %cst_22 : f32 to vector<8x1x8xf32>
    %100 = vector.extract_strided_slice %95 {offsets = [0, 0, 0], sizes = [8, 7, 8], strides = [1, 1, 1]} : vector<8x8x8xf32> to vector<8x7x8xf32>
    %101 = tpu.concatenate %99, %100 in 1 : vector<8x1x8xf32>, vector<8x7x8xf32> -> vector<8x8x8xf32>
    %102 = vector.extract_strided_slice %101 {offsets = [0, 0, 0], sizes = [7, 8, 8], strides = [1, 1, 1]} : vector<8x8x8xf32> to vector<7x8x8xf32>
    %103 = tpu.concatenate %98, %102 in 0 : vector<1x8x8xf32>, vector<7x8x8xf32> -> vector<8x8x8xf32>
    %104 = vector.extract_strided_slice %96 {offsets = [0, 0, 0], sizes = [1, 1, 8], strides = [1, 1, 1]} : vector<3x3x8xf32> to vector<1x1x8xf32>
    %105 = vector.shape_cast %104 : vector<1x1x8xf32> to vector<8xf32>
    %106 = vector.shape_cast %105 : vector<8xf32> to vector<1x1x8xf32>
    %107 = vector.broadcast %106 : vector<1x1x8xf32> to vector<8x8x8xf32>
    %108 = arith.mulf %103, %107 : vector<8x8x8xf32>
    %109 = vector.extract_strided_slice %93 {offsets = [0, 0, 0], sizes = [7, 8, 8], strides = [1, 1, 1]} : vector<8x8x8xf32> to vector<7x8x8xf32>
    %110 = tpu.concatenate %98, %109 in 0 : vector<1x8x8xf32>, vector<7x8x8xf32> -> vector<8x8x8xf32>
    %111 = vector.extract_strided_slice %96 {offsets = [0, 1, 0], sizes = [1, 1, 8], strides = [1, 1, 1]} : vector<3x3x8xf32> to vector<1x1x8xf32>
    %112 = vector.shape_cast %111 : vector<1x1x8xf32> to vector<8xf32>
    %113 = vector.shape_cast %112 : vector<8xf32> to vector<1x1x8xf32>
    %114 = vector.broadcast %113 : vector<1x1x8xf32> to vector<8x8x8xf32>
    %115 = arith.mulf %110, %114 : vector<8x8x8xf32>
    %116 = arith.addf %108, %115 : vector<8x8x8xf32>
    %117 = vector.extract_strided_slice %95 {offsets = [0, 0, 0], sizes = [7, 8, 8], strides = [1, 1, 1]} : vector<8x8x8xf32> to vector<7x8x8xf32>
    %118 = tpu.concatenate %98, %117 in 0 : vector<1x8x8xf32>, vector<7x8x8xf32> -> vector<8x8x8xf32>
    %119 = vector.extract_strided_slice %96 {offsets = [0, 2, 0], sizes = [1, 1, 8], strides = [1, 1, 1]} : vector<3x3x8xf32> to vector<1x1x8xf32>
    %120 = vector.shape_cast %119 : vector<1x1x8xf32> to vector<8xf32>
    %121 = vector.shape_cast %120 : vector<8xf32> to vector<1x1x8xf32>
    %122 = vector.broadcast %121 : vector<1x1x8xf32> to vector<8x8x8xf32>
    %123 = arith.mulf %118, %122 : vector<8x8x8xf32>
    %124 = arith.addf %116, %123 : vector<8x8x8xf32>
    %125 = vector.extract_strided_slice %91 {offsets = [0, 0, 0], sizes = [8, 7, 8], strides = [1, 1, 1]} : vector<8x8x8xf32> to vector<8x7x8xf32>
    %126 = tpu.concatenate %99, %125 in 1 : vector<8x1x8xf32>, vector<8x7x8xf32> -> vector<8x8x8xf32>
    %127 = vector.extract_strided_slice %96 {offsets = [1, 0, 0], sizes = [1, 1, 8], strides = [1, 1, 1]} : vector<3x3x8xf32> to vector<1x1x8xf32>
    %128 = vector.shape_cast %127 : vector<1x1x8xf32> to vector<8xf32>
    %129 = vector.shape_cast %128 : vector<8xf32> to vector<1x1x8xf32>
    %130 = vector.broadcast %129 : vector<1x1x8xf32> to vector<8x8x8xf32>
    %131 = arith.mulf %126, %130 : vector<8x8x8xf32>
    %132 = arith.addf %124, %131 : vector<8x8x8xf32>
    %133 = vector.extract_strided_slice %96 {offsets = [1, 1, 0], sizes = [1, 1, 8], strides = [1, 1, 1]} : vector<3x3x8xf32> to vector<1x1x8xf32>
    %134 = vector.shape_cast %133 : vector<1x1x8xf32> to vector<8xf32>
    %135 = vector.shape_cast %134 : vector<8xf32> to vector<1x1x8xf32>
    %136 = vector.broadcast %135 : vector<1x1x8xf32> to vector<8x8x8xf32>
    %137 = arith.mulf %89, %136 : vector<8x8x8xf32>
    %138 = arith.addf %132, %137 : vector<8x8x8xf32>
    %139 = vector.extract_strided_slice %96 {offsets = [1, 2, 0], sizes = [1, 1, 8], strides = [1, 1, 1]} : vector<3x3x8xf32> to vector<1x1x8xf32>
    %140 = vector.shape_cast %139 : vector<1x1x8xf32> to vector<8xf32>
    %141 = vector.shape_cast %140 : vector<8xf32> to vector<1x1x8xf32>
    %142 = vector.broadcast %141 : vector<1x1x8xf32> to vector<8x8x8xf32>
    %143 = arith.mulf %91, %142 : vector<8x8x8xf32>
    %144 = arith.addf %138, %143 : vector<8x8x8xf32>
    %145 = vector.extract_strided_slice %96 {offsets = [2, 0, 0], sizes = [1, 1, 8], strides = [1, 1, 1]} : vector<3x3x8xf32> to vector<1x1x8xf32>
    %146 = vector.shape_cast %145 : vector<1x1x8xf32> to vector<8xf32>
    %147 = vector.shape_cast %146 : vector<8xf32> to vector<1x1x8xf32>
    %148 = vector.broadcast %147 : vector<1x1x8xf32> to vector<8x8x8xf32>
    %149 = arith.mulf %101, %148 : vector<8x8x8xf32>
    %150 = arith.addf %144, %149 : vector<8x8x8xf32>
    %151 = vector.extract_strided_slice %96 {offsets = [2, 1, 0], sizes = [1, 1, 8], strides = [1, 1, 1]} : vector<3x3x8xf32> to vector<1x1x8xf32>
    %152 = vector.shape_cast %151 : vector<1x1x8xf32> to vector<8xf32>
    %153 = vector.shape_cast %152 : vector<8xf32> to vector<1x1x8xf32>
    %154 = vector.broadcast %153 : vector<1x1x8xf32> to vector<8x8x8xf32>
    %155 = arith.mulf %93, %154 : vector<8x8x8xf32>
    %156 = arith.addf %150, %155 : vector<8x8x8xf32>
    %157 = vector.extract_strided_slice %96 {offsets = [2, 2, 0], sizes = [1, 1, 8], strides = [1, 1, 1]} : vector<3x3x8xf32> to vector<1x1x8xf32>
    %158 = vector.shape_cast %157 : vector<1x1x8xf32> to vector<8xf32>
    %159 = vector.shape_cast %158 : vector<8xf32> to vector<1x1x8xf32>
    %160 = vector.broadcast %159 : vector<1x1x8xf32> to vector<8x8x8xf32>
    %161 = arith.mulf %95, %160 : vector<8x8x8xf32>
    %162 = arith.addf %156, %161 : vector<8x8x8xf32>
    %163 = vector.shape_cast %97 : vector<1x8xf32> to vector<1x1x8xf32>
    %164 = vector.broadcast %163 : vector<1x1x8xf32> to vector<8x8x8xf32>
    %165 = arith.addf %162, %164 : vector<8x8x8xf32>
    %166 = vector.shape_cast %78 : vector<8x8x8xf32> to vector<64x8xf32>
    %c0_23 = arith.constant 0 : index
    %c0_24 = arith.constant 0 : index
    %167 = vector.load %arg8[%c0_23, %c0_24] : memref<8x16xf32, #tpu.memory_space<vmem>>, vector<8x16xf32>
    %cst_25 = arith.constant dense<0.000000e+00> : vector<64x16xf32>
    %168 = tpu.matmul %166, %167, %cst_25 {dimension_numbers = #tpu.dot_dimension_numbers<[1], [0], [0], [1], [0, 0, 1, 1], [], []>} : vector<64x8xf32>, vector<8x16xf32>, vector<64x16xf32> -> vector<64x16xf32>
    %169 = vector.shape_cast %165 : vector<8x8x8xf32> to vector<64x8xf32>
    %c0_26 = arith.constant 0 : index
    %c0_27 = arith.constant 0 : index
    %170 = vector.load %arg9[%c0_26, %c0_27] : memref<8x16xf32, #tpu.memory_space<vmem>>, vector<8x16xf32>
    %cst_28 = arith.constant dense<0.000000e+00> : vector<64x16xf32>
    %171 = tpu.matmul %169, %170, %cst_28 {dimension_numbers = #tpu.dot_dimension_numbers<[1], [0], [0], [1], [0, 0, 1, 1], [], []>} : vector<64x8xf32>, vector<8x16xf32>, vector<64x16xf32> -> vector<64x16xf32>
    %172 = arith.addf %168, %171 : vector<64x16xf32>
    %c0_29 = arith.constant 0 : index
    %c0_30 = arith.constant 0 : index
    %173 = vector.load %arg10[%c0_29, %c0_30] : memref<1x16xf32, #tpu.memory_space<vmem>>, vector<1x16xf32>
    %174 = vector.broadcast %173 : vector<1x16xf32> to vector<64x16xf32>
    %175 = arith.addf %172, %174 : vector<64x16xf32>
    %cst_31 = arith.constant 0.000000e+00 : f32
    %176 = vector.broadcast %cst_31 : f32 to vector<64x16xf32>
    %177 = arith.maximumf %175, %176 : vector<64x16xf32>
    %178 = vector.shape_cast %177 : vector<64x16xf32> to vector<1x64x16xf32>
    %c0_32 = arith.constant 0 : index
    %c0_33 = arith.constant 0 : index
    %c0_34 = arith.constant 0 : index
    %179 = vector.load %arg11[%c0_32, %c0_33, %c0_34] : memref<1x64x16xf32, #tpu.memory_space<vmem>>, vector<1x64x16xf32>
    tpu.vector_store %arg11[%c0_32, %c0_33, %c0_34], %178 {strides = array<i32>} : memref<1x64x16xf32, #tpu.memory_space<vmem>>, vector<1x64x16xf32>,
    return
  }
  func.func @transform_0(%arg0: i32) -> (i32, i32, i32, i32, i32) {
    %c0_i32 = arith.constant 0 : i32
    %c0_i32_0 = arith.constant 0 : i32
    %c0_i32_1 = arith.constant 0 : i32
    %c0_i32_2 = arith.constant 0 : i32
    %c0_i32_3 = arith.constant 0 : i32
    return %arg0, %c0_i32, %c0_i32_0, %c0_i32_1, %c0_i32_2 : i32, i32, i32, i32, i32
  }
  func.func @transform_1(%arg0: i32) -> (i32, i32, i32) {
    %c0_i32 = arith.constant 0 : i32
    %c0_i32_0 = arith.constant 0 : i32
    %c0_i32_1 = arith.constant 0 : i32
    %c0_i32_2 = arith.constant 0 : i32
    return %c0_i32, %c0_i32_0, %c0_i32_1 : i32, i32, i32
  }
  func.func @transform_2(%arg0: i32) -> (i32, i32) {
    %c0_i32 = arith.constant 0 : i32
    %c0_i32_0 = arith.constant 0 : i32
    %c0_i32_1 = arith.constant 0 : i32
    return %c0_i32, %c0_i32_0 : i32, i32
  }
  func.func @transform_3(%arg0: i32) -> (i32, i32) {
    %c0_i32 = arith.constant 0 : i32
    %c0_i32_0 = arith.constant 0 : i32
    %c0_i32_1 = arith.constant 0 : i32
    return %c0_i32, %c0_i32_0 : i32, i32
  }
  func.func @transform_4(%arg0: i32) -> (i32, i32) {
    %c0_i32 = arith.constant 0 : i32
    %c0_i32_0 = arith.constant 0 : i32
    %c0_i32_1 = arith.constant 0 : i32
    return %c0_i32, %c0_i32_0 : i32, i32
  }
  func.func @transform_5(%arg0: i32) -> (i32, i32, i32) {
    %c0_i32 = arith.constant 0 : i32
    %c0_i32_0 = arith.constant 0 : i32
    %c0_i32_1 = arith.constant 0 : i32
    %c0_i32_2 = arith.constant 0 : i32
    return %c0_i32, %c0_i32_0, %c0_i32_1 : i32, i32, i32
  }
  func.func @transform_6(%arg0: i32) -> (i32, i32) {
    %c0_i32 = arith.constant 0 : i32
    %c0_i32_0 = arith.constant 0 : i32
    %c0_i32_1 = arith.constant 0 : i32
    return %c0_i32, %c0_i32_0 : i32, i32
  }
  func.func @transform_7(%arg0: i32) -> (i32, i32) {
    %c0_i32 = arith.constant 0 : i32
    %c0_i32_0 = arith.constant 0 : i32
    %c0_i32_1 = arith.constant 0 : i32
    return %c0_i32, %c0_i32_0 : i32, i32
  }
  func.func @transform_8(%arg0: i32) -> (i32, i32) {
    %c0_i32 = arith.constant 0 : i32
    %c0_i32_0 = arith.constant 0 : i32
    %c0_i32_1 = arith.constant 0 : i32
    return %c0_i32, %c0_i32_0 : i32, i32
  }
  func.func @transform_9(%arg0: i32) -> (i32, i32) {
    %c0_i32 = arith.constant 0 : i32
    %c0_i32_0 = arith.constant 0 : i32
    %c0_i32_1 = arith.constant 0 : i32
    return %c0_i32, %c0_i32_0 : i32, i32
  }
  func.func @transform_10(%arg0: i32) -> (i32, i32, i32) {
    %c0_i32 = arith.constant 0 : i32
    %c0_i32_0 = arith.constant 0 : i32
    %c0_i32_1 = arith.constant 0 : i32
    return %arg0, %c0_i32, %c0_i32_0 : i32, i32, i32
  }
}

</mosaic_0001>

<llo_original>
// kernel: downblock_forward.1
$region0: #{downblock_forward.1}
  #allocation0 [shape = 'u32[]', space=smem, size = 0x4, offset = 0x4, fixed_abs, tag = 'smem constant byte address 0x4 - core index']
  #allocation1 [shape = 'u32[144,128]{1,0:T(1,128)}', space=vmem, size = 0x12000, scoped, tag = 'internal scratch']
  %s0 = inlined_call_operand.vmem [shape: f32[2,4,8,8,8], index: 0, kind: input, shape index: {}]
  %s1 = inlined_call_operand.vmem [shape: f32[3,3,8], index: 1, kind: input, shape index: {}]
  %s2 = inlined_call_operand.vmem [shape: f32[1,8], index: 2, kind: input, shape index: {}]
  %s3 = inlined_call_operand.vmem [shape: f32[8,8], index: 3, kind: input, shape index: {}]
  %s4 = inlined_call_operand.vmem [shape: f32[1,8], index: 4, kind: input, shape index: {}]
  %s5 = inlined_call_operand.vmem [shape: f32[3,3,8], index: 5, kind: input, shape index: {}]
  %s6 = inlined_call_operand.vmem [shape: f32[1,8], index: 6, kind: input, shape index: {}]
  %s7 = inlined_call_operand.vmem [shape: f32[8,16], index: 7, kind: input, shape index: {}]
  %s8 = inlined_call_operand.vmem [shape: f32[8,16], index: 8, kind: input, shape index: {}]
  %s9 = inlined_call_operand.vmem [shape: f32[1,16], index: 9, kind: input, shape index: {}]
  %s10 = inlined_call_operand.hbm [shape: f32[2,64,16], index: 10, kind: output, shape index: {}]
  %s11 = sld [smem:[#allocation0]]
  $region73: #{downblock_forward.1} parent=0
    _
  %s13 = ssub.s32 1, %s11
  %s14 = scalar_select 0, %s13, %s11
  $region1: #{downblock_forward.1} parent=0
    #allocation2 [shape = 'u8[65536]{0}', space=vmem, size = 0x10000, scoped, tag = 'output window, operand 0']
    #allocation3 [shape = 's32[2]{0}', space=sflag, size = 0x8, scoped, tag = 'scoped memory for downblock_forward.1']
    %15 = vsyncpa [#allocation3], 0
    %s16 = scalar_lea.sflag [#allocation3], 1
    %17 = vsyncpa %s16, 0
    loop: start=0, step=1, limit=4
    $region2: #{downblock_forward.1} parent=1 // loop_pre_header
      _
    $region3: #{downblock_forward.1} parent=1 // loop_header
      %s19 = sphi 0, %s23
      %p20 = scmp.ge.s32.totalorder %s19, 4
      %s29 = sphi 0, %s31
      %s32 = sphi 0, %s29
      %s33 = sphi 0, %s32
      %s49 = sphi 0, %s33
      %s53 = sphi 0, %s53
      %s55 = sphi 0, %s53
      %s56 = sphi 0, %s55
      %s70 = sphi 0, %s56
      %s74 = sphi 0, %s74
      %s76 = sphi 0, %s74
      %s77 = sphi 0, %s76
      %s91 = sphi 0, %s77
      %s95 = sphi 0, %s95
      %s97 = sphi 0, %s95
      %s98 = sphi 0, %s97
      %s112 = sphi 0, %s98
      %s116 = sphi 0, %s116
      %s118 = sphi 0, %s116
      %s119 = sphi 0, %s118
      %s133 = sphi 0, %s119
      %s137 = sphi 0, %s137
      %s139 = sphi 0, %s137
      %s140 = sphi 0, %s139
      %s154 = sphi 0, %s140
      %s158 = sphi 0, %s158
      %s160 = sphi 0, %s158
      %s161 = sphi 0, %s160
      %s175 = sphi 0, %s161
      %s179 = sphi 0, %s179
      %s181 = sphi 0, %s179
      %s182 = sphi 0, %s181
      %s196 = sphi 0, %s182
      %s200 = sphi 0, %s200
      %s202 = sphi 0, %s200
      %s203 = sphi 0, %s202
      %s217 = sphi 0, %s203
      %s221 = sphi 0, %s221
      %s223 = sphi 0, %s221
      %s224 = sphi 0, %s223
      %s238 = sphi 0, %s224
      %s244 = sphi 0, %s246
      %s247 = sphi 0, %s244
      %s248 = sphi 0, %s247
      %s264 = sphi 0, %s248
    $region4: #{downblock_forward.1} parent=1 // loop_header_branch
      %22 = sbr.rel (%p20) target = $region8
    $region5: #{downblock_forward.1} parent=1 // loop_body
      %s24 = ssub.s32 %s19, 1
      %s25 = ssub.s32 %s19, 2
      %s26 = sadd.s32 %s19, 1
      %s27 = ssub.s32 %s19, %s26
      %p28 = scmp.eq.s32.totalorder %s27, 0
      %s30 = sadd.s32 %s29, 1
      %s31 = scalar_select %p28, %s29, %s30
      %p34 = pneg %p28
      %p35 = scmp.eq.s32.totalorder %s19, 1
      %p36 = por %p34, %p35
      %p37 = scmp.ne.s32.totalorder %s29, %s32
      %p38 = scmp.eq.s32.totalorder %s19, 0
      %p39 = por %p37, %p38
      %p40 = scmp.ne.s32.totalorder %s29, %s32
      %p41 = scmp.eq.s32.totalorder %s24, 1
      %p42 = por %p40, %p41
      %p43 = scmp.ne.s32.totalorder %s32, %s33
      %p44 = scmp.eq.s32.totalorder %s24, 0
      %p45 = por %p43, %p44
      %p46 = scmp.ne.s32.totalorder %s32, %s33
      %p47 = scmp.eq.s32.totalorder %s25, 1
      %p48 = por %p46, %p47
      %p50 = scmp.ne.s32.totalorder %s33, %s49
      %p51 = scmp.eq.s32.totalorder %s25, 0
      %p52 = por %p50, %p51
      %s54 = sadd.s32 %s53, 1
      %p57 = scmp.eq.s32.totalorder %s19, 1
      %p58 = scmp.ne.s32.totalorder %s53, %s55
      %p59 = scmp.eq.s32.totalorder %s19, 0
      %p60 = por %p58, %p59
      %p61 = scmp.ne.s32.totalorder %s53, %s55
      %p62 = scmp.eq.s32.totalorder %s24, 1
      %p63 = por %p61, %p62
      %p64 = scmp.ne.s32.totalorder %s55, %s56
      %p65 = scmp.eq.s32.totalorder %s24, 0
      %p66 = por %p64, %p65
      %p67 = scmp.ne.s32.totalorder %s55, %s56
      %p68 = scmp.eq.s32.totalorder %s25, 1
      %p69 = por %p67, %p68
      %p71 = scmp.ne.s32.totalorder %s56, %s70
      %p72 = scmp.eq.s32.totalorder %s25, 0
      %p73 = por %p71, %p72
      %s75 = sadd.s32 %s74, 1
      %p78 = scmp.eq.s32.totalorder %s19, 1
      %p79 = scmp.ne.s32.totalorder %s74, %s76
      %p80 = scmp.eq.s32.totalorder %s19, 0
      %p81 = por %p79, %p80
      %p82 = scmp.ne.s32.totalorder %s74, %s76
      %p83 = scmp.eq.s32.totalorder %s24, 1
      %p84 = por %p82, %p83
      %p85 = scmp.ne.s32.totalorder %s76, %s77
      %p86 = scmp.eq.s32.totalorder %s24, 0
      %p87 = por %p85, %p86
      %p88 = scmp.ne.s32.totalorder %s76, %s77
      %p89 = scmp.eq.s32.totalorder %s25, 1
      %p90 = por %p88, %p89
      %p92 = scmp.ne.s32.totalorder %s77, %s91
      %p93 = scmp.eq.s32.totalorder %s25, 0
      %p94 = por %p92, %p93
      %s96 = sadd.s32 %s95, 1
      %p99 = scmp.eq.s32.totalorder %s19, 1
      %p100 = scmp.ne.s32.totalorder %s95, %s97
      %p101 = scmp.eq.s32.totalorder %s19, 0
      %p102 = por %p100, %p101
      %p103 = scmp.ne.s32.totalorder %s95, %s97
      %p104 = scmp.eq.s32.totalorder %s24, 1
      %p105 = por %p103, %p104
      %p106 = scmp.ne.s32.totalorder %s97, %s98
      %p107 = scmp.eq.s32.totalorder %s24, 0
      %p108 = por %p106, %p107
      %p109 = scmp.ne.s32.totalorder %s97, %s98
      %p110 = scmp.eq.s32.totalorder %s25, 1
      %p111 = por %p109, %p110
      %p113 = scmp.ne.s32.totalorder %s98, %s112
      %p114 = scmp.eq.s32.totalorder %s25, 0
      %p115 = por %p113, %p114
      %s117 = sadd.s32 %s116, 1
      %p120 = scmp.eq.s32.totalorder %s19, 1
      %p121 = scmp.ne.s32.totalorder %s116, %s118
      %p122 = scmp.eq.s32.totalorder %s19, 0
      %p123 = por %p121, %p122
      %p124 = scmp.ne.s32.totalorder %s116, %s118
      %p125 = scmp.eq.s32.totalorder %s24, 1
      %p126 = por %p124, %p125
      %p127 = scmp.ne.s32.totalorder %s118, %s119
      %p128 = scmp.eq.s32.totalorder %s24, 0
      %p129 = por %p127, %p128
      %p130 = scmp.ne.s32.totalorder %s118, %s119
      %p131 = scmp.eq.s32.totalorder %s25, 1
      %p132 = por %p130, %p131
      %p134 = scmp.ne.s32.totalorder %s119, %s133
      %p135 = scmp.eq.s32.totalorder %s25, 0
      %p136 = por %p134, %p135
      %s138 = sadd.s32 %s137, 1
      %p141 = scmp.eq.s32.totalorder %s19, 1
      %p142 = scmp.ne.s32.totalorder %s137, %s139
      %p143 = scmp.eq.s32.totalorder %s19, 0
      %p144 = por %p142, %p143
      %p145 = scmp.ne.s32.totalorder %s137, %s139
      %p146 = scmp.eq.s32.totalorder %s24, 1
      %p147 = por %p145, %p146
      %p148 = scmp.ne.s32.totalorder %s139, %s140
      %p149 = scmp.eq.s32.totalorder %s24, 0
      %p150 = por %p148, %p149
      %p151 = scmp.ne.s32.totalorder %s139, %s140
      %p152 = scmp.eq.s32.totalorder %s25, 1
      %p153 = por %p151, %p152
      %p155 = scmp.ne.s32.totalorder %s140, %s154
      %p156 = scmp.eq.s32.totalorder %s25, 0
      %p157 = por %p155, %p156
      %s159 = sadd.s32 %s158, 1
      %p162 = scmp.eq.s32.totalorder %s19, 1
      %p163 = scmp.ne.s32.totalorder %s158, %s160
      %p164 = scmp.eq.s32.totalorder %s19, 0
      %p165 = por %p163, %p164
      %p166 = scmp.ne.s32.totalorder %s158, %s160
      %p167 = scmp.eq.s32.totalorder %s24, 1
      %p168 = por %p166, %p167
      %p169 = scmp.ne.s32.totalorder %s160, %s161
      %p170 = scmp.eq.s32.totalorder %s24, 0
      %p171 = por %p169, %p170
      %p172 = scmp.ne.s32.totalorder %s160, %s161
      %p173 = scmp.eq.s32.totalorder %s25, 1
      %p174 = por %p172, %p173
      %p176 = scmp.ne.s32.totalorder %s161, %s175
      %p177 = scmp.eq.s32.totalorder %s25, 0
      %p178 = por %p176, %p177
      %s180 = sadd.s32 %s179, 1
      %p183 = scmp.eq.s32.totalorder %s19, 1
      %p184 = scmp.ne.s32.totalorder %s179, %s181
      %p185 = scmp.eq.s32.totalorder %s19, 0
      %p186 = por %p184, %p185
      %p187 = scmp.ne.s32.totalorder %s179, %s181
      %p188 = scmp.eq.s32.totalorder %s24, 1
      %p189 = por %p187, %p188
      %p190 = scmp.ne.s32.totalorder %s181, %s182
      %p191 = scmp.eq.s32.totalorder %s24, 0
      %p192 = por %p190, %p191
      %p193 = scmp.ne.s32.totalorder %s181, %s182
      %p194 = scmp.eq.s32.totalorder %s25, 1
      %p195 = por %p193, %p194
      %p197 = scmp.ne.s32.totalorder %s182, %s196
      %p198 = scmp.eq.s32.totalorder %s25, 0
      %p199 = por %p197, %p198
      %s201 = sadd.s32 %s200, 1
      %p204 = scmp.eq.s32.totalorder %s19, 1
      %p205 = scmp.ne.s32.totalorder %s200, %s202
      %p206 = scmp.eq.s32.totalorder %s19, 0
      %p207 = por %p205, %p206
      %p208 = scmp.ne.s32.totalorder %s200, %s202
      %p209 = scmp.eq.s32.totalorder %s24, 1
      %p210 = por %p208, %p209
      %p211 = scmp.ne.s32.totalorder %s202, %s203
      %p212 = scmp.eq.s32.totalorder %s24, 0
      %p213 = por %p211, %p212
      %p214 = scmp.ne.s32.totalorder %s202, %s203
      %p215 = scmp.eq.s32.totalorder %s25, 1
      %p216 = por %p214, %p215
      %p218 = scmp.ne.s32.totalorder %s203, %s217
      %p219 = scmp.eq.s32.totalorder %s25, 0
      %p220 = por %p218, %p219
      %s222 = sadd.s32 %s221, 1
      %p225 = scmp.eq.s32.totalorder %s19, 1
      %p226 = scmp.ne.s32.totalorder %s221, %s223
      %p227 = scmp.eq.s32.totalorder %s19, 0
      %p228 = por %p226, %p227
      %p229 = scmp.ne.s32.totalorder %s221, %s223
      %p230 = scmp.eq.s32.totalorder %s24, 1
      %p231 = por %p229, %p230
      %p232 = scmp.ne.s32.totalorder %s223, %s224
      %p233 = scmp.eq.s32.totalorder %s24, 0
      %p234 = por %p232, %p233
      %p235 = scmp.ne.s32.totalorder %s223, %s224
      %p236 = scmp.eq.s32.totalorder %s25, 1
      %p237 = por %p235, %p236
      %p239 = scmp.ne.s32.totalorder %s224, %s238
      %p240 = scmp.eq.s32.totalorder %s25, 0
      %p241 = por %p239, %p240
      %s242 = ssub.s32 %s19, %s26
      %p243 = scmp.eq.s32.totalorder %s242, 0
      %s245 = sadd.s32 %s244, 1
      %s246 = scalar_select %p243, %s244, %s245
      %p249 = pneg %p243
      %p250 = scmp.eq.s32.totalorder %s19, 1
      %p251 = por %p249, %p250
      %p252 = scmp.ne.s32.totalorder %s244, %s247
      %p253 = scmp.eq.s32.totalorder %s19, 0
      %p254 = por %p252, %p253
      %p255 = scmp.ne.s32.totalorder %s244, %s247
      %p256 = scmp.eq.s32.totalorder %s24, 1
      %p257 = por %p255, %p256
      %p258 = scmp.ne.s32.totalorder %s247, %s248
      %p259 = scmp.eq.s32.totalorder %s24, 0
      %p260 = por %p258, %p259
      %p261 = scmp.ne.s32.totalorder %s247, %s248
      %p262 = scmp.eq.s32.totalorder %s25, 1
      %p263 = por %p261, %p262
      %p265 = scmp.ne.s32.totalorder %s248, %s264
      %p266 = scmp.eq.s32.totalorder %s25, 0
      %p267 = por %p265, %p266
      %p268 = scmp.le.s32.totalorder 1, %s19
      %p269 = scmp.lt.s32.totalorder %s19, 3
      %p270 = pnand %p268, %p269
      %p271 = pneg %p270
      // Predicated region
      $region9: #{downblock_forward.1} parent=5 // pred_check
        _
      $region10: #{downblock_forward.1} parent=5 // pred_check_branch
        %273 = sbr.rel (%p270) target = $region12
      $region11: #{downblock_forward.1} parent=5 // pred_region
        %s274 = ssub.s32 %s19, 1
        // Predicated region
        $region13: #{downblock_forward.1} parent=11 // pred_check
          %p275 = pneg %p66
        $region14: #{downblock_forward.1} parent=11 // pred_check_branch
          %277 = sbr.rel (%p275) target = $region16
        $region15: #{downblock_forward.1} parent=11 // pred_region
          _
        $region16: #{downblock_forward.1} parent=11 // pred_fallthru
          _
        // Predicated region
        $region17: #{downblock_forward.1} parent=11 // pred_check
          %p278 = pneg %p87
        $region18: #{downblock_forward.1} parent=11 // pred_check_branch
          %280 = sbr.rel (%p278) target = $region20
        $region19: #{downblock_forward.1} parent=11 // pred_region
          _
        $region20: #{downblock_forward.1} parent=11 // pred_fallthru
          _
        // Predicated region
        $region21: #{downblock_forward.1} parent=11 // pred_check
          %p281 = pneg %p108
        $region22: #{downblock_forward.1} parent=11 // pred_check_branch
          %283 = sbr.rel (%p281) target = $region24
        $region23: #{downblock_forward.1} parent=11 // pred_region
          _
        $region24: #{downblock_forward.1} parent=11 // pred_fallthru
          _
        // Predicated region
        $region25: #{downblock_forward.1} parent=11 // pred_check
          %p284 = pneg %p129
        $region26: #{downblock_forward.1} parent=11 // pred_check_branch
          %286 = sbr.rel (%p284) target = $region28
        $region27: #{downblock_forward.1} parent=11 // pred_region
          _
        $region28: #{downblock_forward.1} parent=11 // pred_fallthru
          _
        // Predicated region
        $region29: #{downblock_forward.1} parent=11 // pred_check
          %p287 = pneg %p150
        $region30: #{downblock_forward.1} parent=11 // pred_check_branch
          %289 = sbr.rel (%p287) target = $region32
        $region31: #{downblock_forward.1} parent=11 // pred_region
          _
        $region32: #{downblock_forward.1} parent=11 // pred_fallthru
          _
        // Predicated region
        $region33: #{downblock_forward.1} parent=11 // pred_check
          %p290 = pneg %p171
        $region34: #{downblock_forward.1} parent=11 // pred_check_branch
          %292 = sbr.rel (%p290) target = $region36
        $region35: #{downblock_forward.1} parent=11 // pred_region
          _
        $region36: #{downblock_forward.1} parent=11 // pred_fallthru
          _
        // Predicated region
        $region37: #{downblock_forward.1} parent=11 // pred_check
          %p293 = pneg %p192
        $region38: #{downblock_forward.1} parent=11 // pred_check_branch
          %295 = sbr.rel (%p293) target = $region40
        $region39: #{downblock_forward.1} parent=11 // pred_region
          _
        $region40: #{downblock_forward.1} parent=11 // pred_fallthru
          _
        // Predicated region
        $region41: #{downblock_forward.1} parent=11 // pred_check
          %p296 = pneg %p213
        $region42: #{downblock_forward.1} parent=11 // pred_check_branch
          %298 = sbr.rel (%p296) target = $region44
        $region43: #{downblock_forward.1} parent=11 // pred_region
          _
        $region44: #{downblock_forward.1} parent=11 // pred_fallthru
          _
        // Predicated region
        $region45: #{downblock_forward.1} parent=11 // pred_check
          %p299 = pneg %p234
        $region46: #{downblock_forward.1} parent=11 // pred_check_branch
          %301 = sbr.rel (%p299) target = $region48
        $region47: #{downblock_forward.1} parent=11 // pred_region
          _
        $region48: #{downblock_forward.1} parent=11 // pred_fallthru
          _
      $region12: #{downblock_forward.1} parent=5 // pred_fallthru
        _
      %p302 = scmp.lt.s32.totalorder %s19, 2
      // Predicated region
      $region49: #{downblock_forward.1} parent=5 // pred_check
        %p303 = pneg %p302
      $region50: #{downblock_forward.1} parent=5 // pred_check_branch
        %305 = sbr.rel (%p303) target = $region52
      $region51: #{downblock_forward.1} parent=5 // pred_region
        // Predicated region
        $region53: #{downblock_forward.1} parent=51 // pred_check
          %p306 = pneg %p39
        $region54: #{downblock_forward.1} parent=51 // pred_check_branch
          %308 = sbr.rel (%p306) target = $region56
        $region55: #{downblock_forward.1} parent=51 // pred_region
          %p309 = scmp.lt.s32.totalorder %s19, 1
          %s310 = scalar_select %p309, %s19, 1
          %s311 = smul.addr %s310, 32
          %s312 = smul.addr %s311, 8
          %s313 = scalar_lea.vmem %s0, %s312
        $region56: #{downblock_forward.1} parent=51 // pred_fallthru
          _
      $region52: #{downblock_forward.1} parent=5 // pred_fallthru
        _
      %p314 = scmp.le.s32.totalorder 1, %s19
      %p315 = scmp.lt.s32.totalorder %s19, 3
      %p316 = pnand %p314, %p315
      %p317 = pneg %p316
      // Predicated region
      $region57: #{downblock_forward.1} parent=5 // pred_check
        _
      $region58: #{downblock_forward.1} parent=5 // pred_check_branch
        %319 = sbr.rel (%p316) target = $region60
      $region59: #{downblock_forward.1} parent=5 // pred_region
        %s320 = ssub.s32 %s19, 1
        %p321 = scmp.lt.s32.totalorder %s24, 1
        %s322 = scalar_select %p321, %s24, 1
        %s323 = smul.addr %s322, 32
        %s324 = smul.addr %s323, 8
        %s325 = scalar_lea.vmem %s0, %s324
        %p326 = pneg %p45
        %p327 = pneg %p42
        %p328 = pneg %p66
        %p329 = pneg %p63
        %p330 = pneg %p87
        %p331 = pneg %p84
        %p332 = pneg %p108
        %p333 = pneg %p105
        %p334 = pneg %p129
        %p335 = pneg %p126
        %p336 = pneg %p150
        %p337 = pneg %p147
        %p338 = pneg %p171
        %p339 = pneg %p168
        %p340 = pneg %p192
        %p341 = pneg %p189
        %p342 = pneg %p213
        %p343 = pneg %p210
        %p344 = pneg %p234
        %p345 = pneg %p231
        %p346 = pneg %p260
        %p347 = pneg %p257
        %s348 = sand.u32 %s247, 1
        %s349 = scalar_lea.sflag [#allocation3], %s348
        %s350 = sand.u32 %s247, 1
        %s351 = smul.addr %s350, 64
        %s352 = scalar_lea.vmem [#allocation2], %s351
        %p353 = scmp.lt.s32.totalorder %s24, 1
        %s354 = scalar_select %p353, %s24, 1
        %s355 = smul.addr %s354, 32
        %s356 = smul.addr %s355, 8
        %s357 = scalar_lea.vmem %s0, %s356
        %v358 = vld [vmem:[%s357] sm:$0xff]
        %v359 = vld [vmem:[%s357 + $0x8] sm:$0xff]
        %v360 = vld [vmem:[%s357 + $0x10] sm:$0xff]
        %v361 = vld [vmem:[%s357 + $0x18] sm:$0xff]
        %v362 = vld [vmem:[%s357 + $0x20] sm:$0xff]
        %v363 = vld [vmem:[%s357 + $0x28] sm:$0xff]
        %v364 = vld [vmem:[%s357 + $0x30] sm:$0xff]
        %v365 = vld [vmem:[%s357 + $0x38] sm:$0xff]
        %v366 = vld [vmem:[%s357 + $0x40] sm:$0xff]
        %v367 = vld [vmem:[%s357 + $0x48] sm:$0xff]
        %v368 = vld [vmem:[%s357 + $0x50] sm:$0xff]
        %v369 = vld [vmem:[%s357 + $0x58] sm:$0xff]
        %v370 = vld [vmem:[%s357 + $0x60] sm:$0xff]
        %v371 = vld [vmem:[%s357 + $0x68] sm:$0xff]
        %v372 = vld [vmem:[%s357 + $0x70] sm:$0xff]
        %v373 = vld [vmem:[%s357 + $0x78] sm:$0xff]
        %v374 = vld [vmem:[%s357 + $0x80] sm:$0xff]
        %v375 = vld [vmem:[%s357 + $0x88] sm:$0xff]
        %v376 = vld [vmem:[%s357 + $0x90] sm:$0xff]
        %v377 = vld [vmem:[%s357 + $0x98] sm:$0xff]
        %v378 = vld [vmem:[%s357 + $0xa0] sm:$0xff]
        %v379 = vld [vmem:[%s357 + $0xa8] sm:$0xff]
        %v380 = vld [vmem:[%s357 + $0xb0] sm:$0xff]
        %v381 = vld [vmem:[%s357 + $0xb8] sm:$0xff]
        %v382 = vld [vmem:[%s357 + $0xc0] sm:$0xff]
        %v383 = vld [vmem:[%s357 + $0xc8] sm:$0xff]
        %v384 = vld [vmem:[%s357 + $0xd0] sm:$0xff]
        %v385 = vld [vmem:[%s357 + $0xd8] sm:$0xff]
        %v386 = vld [vmem:[%s357 + $0xe0] sm:$0xff]
        %v387 = vld [vmem:[%s357 + $0xe8] sm:$0xff]
        %v388 = vld [vmem:[%s357 + $0xf0] sm:$0xff]
        %v389 = vld [vmem:[%s357 + $0xf8] sm:$0xff]
        %v390 = vld [vmem:[%s1] sm:$0x7]
        %v391 = vld [vmem:[%s1 + $0x4] sm:$0x7]
        %v392 = vld [vmem:[%s1 + $0x8] sm:$0x7]
        %v393 = vld [vmem:[%s2] sm:$0x1]
        %v402 = vrot.slane %v382, 7
        %v403 = vrot.slane %v383, 7
        %v404 = vrot.slane %v384, 7
        %v405 = vrot.slane %v385, 7
        %v406 = vrot.slane %v386, 7
        %v407 = vrot.slane %v387, 7
        %v408 = vrot.slane %v388, 7
        %v409 = vrot.slane %v389, 7
        %vm418 = vcmask 1040384
        %v419 = vsel %vm418, 0.0, %v402
        %v420 = vsel %vm418, 0.0, %v403
        %v421 = vsel %vm418, 0.0, %v404
        %v422 = vsel %vm418, 0.0, %v405
        %v423 = vsel %vm418, 0.0, %v406
        %v424 = vsel %vm418, 0.0, %v407
        %v425 = vsel %vm418, 0.0, %v408
        %v426 = vsel %vm418, 0.0, %v409
        %v427 = vlaneseq
        %v428 = vshrl.u32 %v427, 7
        %v429 = vsub.s32 0, %v428
        %v430 = vrot.slane %v390, %v429
        %v431 = vmul.f32 %v430, 0.0
        %v432 = vmul.f32 %v419, %v430
        %v433 = vmul.f32 %v420, %v430
        %v434 = vmul.f32 %v421, %v430
        %v435 = vmul.f32 %v422, %v430
        %v436 = vmul.f32 %v423, %v430
        %v437 = vmul.f32 %v424, %v430
        %v438 = vmul.f32 %v425, %v430
        %v439 = vlaneseq
        %v440 = vshrl.u32 %v439, 7
        %v441 = vsub.s32 1, %v440
        %v442 = vrot.slane %v390, %v441
        %v443 = vmul.f32 %v442, 0.0
        %v444 = vmul.f32 %v374, %v442
        %v445 = vmul.f32 %v375, %v442
        %v446 = vmul.f32 %v376, %v442
        %v447 = vmul.f32 %v377, %v442
        %v448 = vmul.f32 %v378, %v442
        %v449 = vmul.f32 %v379, %v442
        %v450 = vmul.f32 %v380, %v442
        %v451 = vadd.f32 %v431, %v443
        %v452 = vadd.f32 %v432, %v444
        %v453 = vadd.f32 %v433, %v445
        %v454 = vadd.f32 %v434, %v446
        %v455 = vadd.f32 %v435, %v447
        %v456 = vadd.f32 %v436, %v448
        %v457 = vadd.f32 %v437, %v449
        %v458 = vadd.f32 %v438, %v450
        %v459 = vlaneseq
        %v460 = vshrl.u32 %v459, 7
        %v461 = vsub.s32 2, %v460
        %v462 = vrot.slane %v390, %v461
        %v463 = vmul.f32 %v462, 0.0
        %v464 = vmul.f32 %v382, %v462
        %v465 = vmul.f32 %v383, %v462
        %v466 = vmul.f32 %v384, %v462
        %v467 = vmul.f32 %v385, %v462
        %v468 = vmul.f32 %v386, %v462
        %v469 = vmul.f32 %v387, %v462
        %v470 = vmul.f32 %v388, %v462
        %v471 = vadd.f32 %v451, %v463
        %v472 = vadd.f32 %v452, %v464
        %v473 = vadd.f32 %v453, %v465
        %v474 = vadd.f32 %v454, %v466
        %v475 = vadd.f32 %v455, %v467
        %v476 = vadd.f32 %v456, %v468
        %v477 = vadd.f32 %v457, %v469
        %v478 = vadd.f32 %v458, %v470
        %v487 = vrot.slane %v366, 7
        %v488 = vrot.slane %v367, 7
        %v489 = vrot.slane %v368, 7
        %v490 = vrot.slane %v369, 7
        %v491 = vrot.slane %v370, 7
        %v492 = vrot.slane %v371, 7
        %v493 = vrot.slane %v372, 7
        %v494 = vrot.slane %v373, 7
        %v503 = vsel %vm418, 0.0, %v487
        %v504 = vsel %vm418, 0.0, %v488
        %v505 = vsel %vm418, 0.0, %v489
        %v506 = vsel %vm418, 0.0, %v490
        %v507 = vsel %vm418, 0.0, %v491
        %v508 = vsel %vm418, 0.0, %v492
        %v509 = vsel %vm418, 0.0, %v493
        %v510 = vsel %vm418, 0.0, %v494
        %v511 = vlaneseq
        %v512 = vshrl.u32 %v511, 7
        %v513 = vsub.s32 0, %v512
        %v514 = vrot.slane %v391, %v513
        %v515 = vmul.f32 %v503, %v514
        %v516 = vmul.f32 %v504, %v514
        %v517 = vmul.f32 %v505, %v514
        %v518 = vmul.f32 %v506, %v514
        %v519 = vmul.f32 %v507, %v514
        %v520 = vmul.f32 %v508, %v514
        %v521 = vmul.f32 %v509, %v514
        %v522 = vmul.f32 %v510, %v514
        %v523 = vadd.f32 %v471, %v515
        %v524 = vadd.f32 %v472, %v516
        %v525 = vadd.f32 %v473, %v517
        %v526 = vadd.f32 %v474, %v518
        %v527 = vadd.f32 %v475, %v519
        %v528 = vadd.f32 %v476, %v520
        %v529 = vadd.f32 %v477, %v521
        %v530 = vadd.f32 %v478, %v522
        %v531 = vlaneseq
        %v532 = vshrl.u32 %v531, 7
        %v533 = vsub.s32 1, %v532
        %v534 = vrot.slane %v391, %v533
        %v535 = vmul.f32 %v358, %v534
        %v536 = vmul.f32 %v359, %v534
        %v537 = vmul.f32 %v360, %v534
        %v538 = vmul.f32 %v361, %v534
        %v539 = vmul.f32 %v362, %v534
        %v540 = vmul.f32 %v363, %v534
        %v541 = vmul.f32 %v364, %v534
        %v542 = vmul.f32 %v365, %v534
        %v543 = vadd.f32 %v523, %v535
        %v544 = vadd.f32 %v524, %v536
        %v545 = vadd.f32 %v525, %v537
        %v546 = vadd.f32 %v526, %v538
        %v547 = vadd.f32 %v527, %v539
        %v548 = vadd.f32 %v528, %v540
        %v549 = vadd.f32 %v529, %v541
        %v550 = vadd.f32 %v530, %v542
        %v551 = vlaneseq
        %v552 = vshrl.u32 %v551, 7
        %v553 = vsub.s32 2, %v552
        %v554 = vrot.slane %v391, %v553
        %v555 = vmul.f32 %v366, %v554
        %v556 = vmul.f32 %v367, %v554
        %v557 = vmul.f32 %v368, %v554
        %v558 = vmul.f32 %v369, %v554
        %v559 = vmul.f32 %v370, %v554
        %v560 = vmul.f32 %v371, %v554
        %v561 = vmul.f32 %v372, %v554
        %v562 = vmul.f32 %v373, %v554
        %v563 = vadd.f32 %v543, %v555
        %v564 = vadd.f32 %v544, %v556
        %v565 = vadd.f32 %v545, %v557
        %v566 = vadd.f32 %v546, %v558
        %v567 = vadd.f32 %v547, %v559
        %v568 = vadd.f32 %v548, %v560
        %v569 = vadd.f32 %v549, %v561
        %v570 = vadd.f32 %v550, %v562
        %v571 = vlaneseq
        %v572 = vshrl.u32 %v571, 7
        %v573 = vsub.s32 0, %v572
        %v574 = vrot.slane %v392, %v573
        %v575 = vmul.f32 %v419, %v574
        %v576 = vmul.f32 %v420, %v574
        %v577 = vmul.f32 %v421, %v574
        %v578 = vmul.f32 %v422, %v574
        %v579 = vmul.f32 %v423, %v574
        %v580 = vmul.f32 %v424, %v574
        %v581 = vmul.f32 %v425, %v574
        %v582 = vmul.f32 %v426, %v574
        %v583 = vadd.f32 %v563, %v575
        %v584 = vadd.f32 %v564, %v576
        %v585 = vadd.f32 %v565, %v577
        %v586 = vadd.f32 %v566, %v578
        %v587 = vadd.f32 %v567, %v579
        %v588 = vadd.f32 %v568, %v580
        %v589 = vadd.f32 %v569, %v581
        %v590 = vadd.f32 %v570, %v582
        %v591 = vlaneseq
        %v592 = vshrl.u32 %v591, 7
        %v593 = vsub.s32 1, %v592
        %v594 = vrot.slane %v392, %v593
        %v595 = vmul.f32 %v374, %v594
        %v596 = vmul.f32 %v375, %v594
        %v597 = vmul.f32 %v376, %v594
        %v598 = vmul.f32 %v377, %v594
        %v599 = vmul.f32 %v378, %v594
        %v600 = vmul.f32 %v379, %v594
        %v601 = vmul.f32 %v380, %v594
        %v602 = vmul.f32 %v381, %v594
        %v603 = vadd.f32 %v583, %v595
        %v604 = vadd.f32 %v584, %v596
        %v605 = vadd.f32 %v585, %v597
        %v606 = vadd.f32 %v586, %v598
        %v607 = vadd.f32 %v587, %v599
        %v608 = vadd.f32 %v588, %v600
        %v609 = vadd.f32 %v589, %v601
        %v610 = vadd.f32 %v590, %v602
        %v611 = vlaneseq
        %v612 = vshrl.u32 %v611, 7
        %v613 = vsub.s32 2, %v612
        %v614 = vrot.slane %v392, %v613
        %v615 = vmul.f32 %v382, %v614
        %v616 = vmul.f32 %v383, %v614
        %v617 = vmul.f32 %v384, %v614
        %v618 = vmul.f32 %v385, %v614
        %v619 = vmul.f32 %v386, %v614
        %v620 = vmul.f32 %v387, %v614
        %v621 = vmul.f32 %v388, %v614
        %v622 = vmul.f32 %v389, %v614
        %v623 = vadd.f32 %v603, %v615
        %v624 = vadd.f32 %v604, %v616
        %v625 = vadd.f32 %v605, %v617
        %v626 = vadd.f32 %v606, %v618
        %v627 = vadd.f32 %v607, %v619
        %v628 = vadd.f32 %v608, %v620
        %v629 = vadd.f32 %v609, %v621
        %v630 = vadd.f32 %v610, %v622
        %v632 = vlaneseq
        %v633 = vshrl.u32 %v632, 7
        %v634 = vsub.s32 0, %v633
        %v635 = vrot.slane %v393, %v634
        %v637 = vadd.f32 %v623, %v635
        %v638 = vadd.f32 %v624, %v635
        %v639 = vadd.f32 %v625, %v635
        %v640 = vadd.f32 %v626, %v635
        %v641 = vadd.f32 %v627, %v635
        %v642 = vadd.f32 %v628, %v635
        %v643 = vadd.f32 %v629, %v635
        %v644 = vadd.f32 %v630, %v635
        %v645 = vld [vmem:[%s3] sm:$0xff]
        %v646 = vld [vmem:[%s4] sm:$0x1]
        %v648 = vlaneseq
        %v649 = vshrl.u32 %v648, 7
        %v650 = vsub.s32 0, %v649
        %v651 = vrot.slane %v646, %v650
        %vm653 = vcmask 64512
        %v655 = vsel %vm653, %v358, 0
        %v658 = vsel %vm653, %v359, 0
        %v661 = vsel %vm653, %v360, 0
        %v664 = vsel %vm653, %v361, 0
        %v667 = vsel %vm653, %v362, 0
        %v670 = vsel %vm653, %v363, 0
        %v673 = vsel %vm653, %v364, 0
        %v676 = vsel %vm653, %v365, 0
        %v678 = vsel %vm653, %v366, 0
        %v680 = vsel %vm653, %v367, 0
        %v682 = vsel %vm653, %v368, 0
        %v684 = vsel %vm653, %v369, 0
        %v686 = vsel %vm653, %v370, 0
        %v688 = vsel %vm653, %v371, 0
        %v690 = vsel %vm653, %v372, 0
        %v692 = vsel %vm653, %v373, 0
        %v695 = vsel %vm653, %v374, 0
        %v698 = vsel %vm653, %v375, 0
        %v701 = vsel %vm653, %v376, 0
        %v704 = vsel %vm653, %v377, 0
        %v707 = vsel %vm653, %v378, 0
        %v710 = vsel %vm653, %v379, 0
        %v713 = vsel %vm653, %v380, 0
        %v716 = vsel %vm653, %v381, 0
        %v718 = vsel %vm653, %v382, 0
        %v720 = vsel %vm653, %v383, 0
        %v722 = vsel %vm653, %v384, 0
        %v724 = vsel %vm653, %v385, 0
        %v726 = vsel %vm653, %v386, 0
        %v728 = vsel %vm653, %v387, 0
        %v730 = vsel %vm653, %v388, 0
        %v732 = vsel %vm653, %v389, 0
        %734 = vmatprep.subr.mxu0 0.0
        %735 = vmatpush1.msra.mxu0 %v645
        %736 = vmatprep.subr.mxu0 0.0
        %737 = vmatpush1.msra.mxu0 0.0
        %738 = vmatprep.subr.mxu0 0.0
        %739 = vmatpush1.msra.mxu0 0.0
        %740 = vmatprep.subr.mxu0 0.0
        %741 = vmatpush1.msra.mxu0 0.0
        %742 = vmatprep.subr.mxu0 0.0
        %743 = vmatpush1.msra.mxu0 0.0
        %744 = vmatprep.subr.mxu0 0.0
        %745 = vmatpush1.msra.mxu0 0.0
        %746 = vmatprep.subr.mxu0 0.0
        %747 = vmatpush1.msra.mxu0 0.0
        %748 = vmatprep.subr.mxu0 0.0
        %749 = vmatpush1.msra.mxu0 0.0
        %750 = vmatprep.subr.mxu0 0.0
        %751 = vmatpush1.msra.mxu0 0.0
        %752 = vmatprep.subr.mxu0 0.0
        %753 = vmatpush1.msra.mxu0 0.0
        %754 = vmatprep.subr.mxu0 0.0
        %755 = vmatpush1.msra.mxu0 0.0
        %756 = vmatprep.subr.mxu0 0.0
        %757 = vmatpush1.msra.mxu0 0.0
        %758 = vmatprep.subr.mxu0 0.0
        %759 = vmatpush1.msra.mxu0 0.0
        %760 = vmatprep.subr.mxu0 0.0
        %761 = vmatpush1.msra.mxu0 0.0
        %762 = vmatprep.subr.mxu0 0.0
        %763 = vmatpush1.msra.mxu0 0.0
        %764 = vmatprep.subr.mxu0 0.0
        %765 = vmatpush1.msra.mxu0 0.0
        %766 = vmatprep.subr.mxu0 0.0
        %767 = vmatpush1.msra.mxu0 0.0
        %768 = vmatprep.subr.mxu0 0.0
        %769 = vmatpush1.msra.mxu0 0.0
        %770 = vmatprep.subr.mxu0 0.0
        %771 = vmatpush1.msra.mxu0 0.0
        %772 = vmatprep.subr.mxu0 0.0
        %773 = vmatpush1.msra.mxu0 0.0
        %774 = vmatprep.subr.mxu0 0.0
        %775 = vmatpush1.msra.mxu0 0.0
        %776 = vmatprep.subr.mxu0 0.0
        %777 = vmatpush1.msra.mxu0 0.0
        %778 = vmatprep.subr.mxu0 0.0
        %779 = vmatpush1.msra.mxu0 0.0
        %780 = vmatprep.subr.mxu0 0.0
        %781 = vmatpush1.msra.mxu0 0.0
        %782 = vmatprep.subr.mxu0 0.0
        %783 = vmatpush1.msra.mxu0 0.0
        %784 = vmatprep.subr.mxu0 0.0
        %785 = vmatpush1.msra.mxu0 0.0
        %786 = vmatprep.subr.mxu0 0.0
        %787 = vmatpush1.msra.mxu0 0.0
        %788 = vmatprep.subr.mxu0 0.0
        %789 = vmatpush1.msra.mxu0 0.0
        %790 = vmatprep.subr.mxu0 0.0
        %791 = vmatpush1.msra.mxu0 0.0
        %792 = vmatprep.subr.mxu0 0.0
        %793 = vmatpush1.msra.mxu0 0.0
        %794 = vmatprep.subr.mxu0 0.0
        %795 = vmatpush1.msra.mxu0 0.0
        %796 = vmatprep.subr.mxu0 0.0
        %797 = vmatpush1.msra.mxu0 0.0
        %798 = vmatprep.mubr.f32.mxu0 0.0
        %799 = vmatmul.mubr.f32.gmra.mrb[0].mxu0 %v655
        %v800 = vpop.f32.mrb[0].mxu0
        %v801 = vadd.f32 %v651, %v800
        %v802 = vpop.f32.mrb[0].mxu0
        %803 = vmatprep.mubr.f32.mxu0 0.0
        %804 = vmatmul.mubr.f32.gmra.mrb[0].mxu0 %v658
        %v805 = vpop.f32.mrb[0].mxu0
        %v806 = vadd.f32 %v651, %v805
        %v807 = vpop.f32.mrb[0].mxu0
        %808 = vmatprep.mubr.f32.mxu0 0.0
        %809 = vmatmul.mubr.f32.gmra.mrb[0].mxu0 %v661
        %v810 = vpop.f32.mrb[0].mxu0
        %v811 = vadd.f32 %v651, %v810
        %v812 = vpop.f32.mrb[0].mxu0
        %813 = vmatprep.mubr.f32.mxu0 0.0
        %814 = vmatmul.mubr.f32.gmra.mrb[0].mxu0 %v664
        %v815 = vpop.f32.mrb[0].mxu0
        %v816 = vadd.f32 %v651, %v815
        %v817 = vpop.f32.mrb[0].mxu0
        %818 = vmatprep.mubr.f32.mxu0 0.0
        %819 = vmatmul.mubr.f32.gmra.mrb[0].mxu0 %v667
        %v820 = vpop.f32.mrb[0].mxu0
        %v821 = vadd.f32 %v651, %v820
        %v822 = vpop.f32.mrb[0].mxu0
        %823 = vmatprep.mubr.f32.mxu0 0.0
        %824 = vmatmul.mubr.f32.gmra.mrb[0].mxu0 %v670
        %v825 = vpop.f32.mrb[0].mxu0
        %v826 = vadd.f32 %v651, %v825
        %v827 = vpop.f32.mrb[0].mxu0
        %828 = vmatprep.mubr.f32.mxu0 0.0
        %829 = vmatmul.mubr.f32.gmra.mrb[0].mxu0 %v673
        %v830 = vpop.f32.mrb[0].mxu0
        %v831 = vadd.f32 %v651, %v830
        %v832 = vpop.f32.mrb[0].mxu0
        %833 = vmatprep.mubr.f32.mxu0 0.0
        %834 = vmatmul.mubr.f32.gmra.mrb[0].mxu0 %v676
        %v835 = vpop.f32.mrb[0].mxu0
        %v836 = vadd.f32 %v651, %v835
        %v837 = vpop.f32.mrb[0].mxu0
        %838 = vmatprep.mubr.f32.mxu0 0.0
        %839 = vmatmul.mubr.f32.gmra.mrb[0].mxu0 %v678
        %v840 = vpop.f32.mrb[0].mxu0
        %v841 = vadd.f32 %v651, %v840
        %v842 = vpop.f32.mrb[0].mxu0
        %843 = vmatprep.mubr.f32.mxu0 0.0
        %844 = vmatmul.mubr.f32.gmra.mrb[0].mxu0 %v680
        %v845 = vpop.f32.mrb[0].mxu0
        %v846 = vadd.f32 %v651, %v845
        %v847 = vpop.f32.mrb[0].mxu0
        %848 = vmatprep.mubr.f32.mxu0 0.0
        %849 = vmatmul.mubr.f32.gmra.mrb[0].mxu0 %v682
        %v850 = vpop.f32.mrb[0].mxu0
        %v851 = vadd.f32 %v651, %v850
        %v852 = vpop.f32.mrb[0].mxu0
        %853 = vmatprep.mubr.f32.mxu0 0.0
        %854 = vmatmul.mubr.f32.gmra.mrb[0].mxu0 %v684
        %v855 = vpop.f32.mrb[0].mxu0
        %v856 = vadd.f32 %v651, %v855
        %v857 = vpop.f32.mrb[0].mxu0
        %858 = vmatprep.mubr.f32.mxu0 0.0
        %859 = vmatmul.mubr.f32.gmra.mrb[0].mxu0 %v686
        %v860 = vpop.f32.mrb[0].mxu0
        %v861 = vadd.f32 %v651, %v860
        %v862 = vpop.f32.mrb[0].mxu0
        %863 = vmatprep.mubr.f32.mxu0 0.0
        %864 = vmatmul.mubr.f32.gmra.mrb[0].mxu0 %v688
        %v865 = vpop.f32.mrb[0].mxu0
        %v866 = vadd.f32 %v651, %v865
        %v867 = vpop.f32.mrb[0].mxu0
        %868 = vmatprep.mubr.f32.mxu0 0.0
        %869 = vmatmul.mubr.f32.gmra.mrb[0].mxu0 %v690
        %v870 = vpop.f32.mrb[0].mxu0
        %v871 = vadd.f32 %v651, %v870
        %v872 = vpop.f32.mrb[0].mxu0
        %873 = vmatprep.mubr.f32.mxu0 0.0
        %874 = vmatmul.mubr.f32.gmra.mrb[0].mxu0 %v692
        %v875 = vpop.f32.mrb[0].mxu0
        %v876 = vadd.f32 %v651, %v875
        %v877 = vpop.f32.mrb[0].mxu0
        %878 = vmatprep.mubr.f32.mxu0 0.0
        %879 = vmatmul.mubr.f32.gmra.mrb[0].mxu0 %v695
        %v880 = vpop.f32.mrb[0].mxu0
        %v881 = vadd.f32 %v651, %v880
        %v882 = vpop.f32.mrb[0].mxu0
        %883 = vmatprep.mubr.f32.mxu0 0.0
        %884 = vmatmul.mubr.f32.gmra.mrb[0].mxu0 %v698
        %v885 = vpop.f32.mrb[0].mxu0
        %v886 = vadd.f32 %v651, %v885
        %v887 = vpop.f32.mrb[0].mxu0
        %888 = vmatprep.mubr.f32.mxu0 0.0
        %889 = vmatmul.mubr.f32.gmra.mrb[0].mxu0 %v701
        %v890 = vpop.f32.mrb[0].mxu0
        %v891 = vadd.f32 %v651, %v890
        %v892 = vpop.f32.mrb[0].mxu0
        %893 = vmatprep.mubr.f32.mxu0 0.0
        %894 = vmatmul.mubr.f32.gmra.mrb[0].mxu0 %v704
        %v895 = vpop.f32.mrb[0].mxu0
        %v896 = vadd.f32 %v651, %v895
        %v897 = vpop.f32.mrb[0].mxu0
        %898 = vmatprep.mubr.f32.mxu0 0.0
        %899 = vmatmul.mubr.f32.gmra.mrb[0].mxu0 %v707
        %v900 = vpop.f32.mrb[0].mxu0
        %v901 = vadd.f32 %v651, %v900
        %v902 = vpop.f32.mrb[0].mxu0
        %903 = vmatprep.mubr.f32.mxu0 0.0
        %904 = vmatmul.mubr.f32.gmra.mrb[0].mxu0 %v710
        %v905 = vpop.f32.mrb[0].mxu0
        %v906 = vadd.f32 %v651, %v905
        %v907 = vpop.f32.mrb[0].mxu0
        %908 = vmatprep.mubr.f32.mxu0 0.0
        %909 = vmatmul.mubr.f32.gmra.mrb[0].mxu0 %v713
        %v910 = vpop.f32.mrb[0].mxu0
        %v911 = vadd.f32 %v651, %v910
        %v912 = vpop.f32.mrb[0].mxu0
        %913 = vmatprep.mubr.f32.mxu0 0.0
        %914 = vmatmul.mubr.f32.gmra.mrb[0].mxu0 %v716
        %v915 = vpop.f32.mrb[0].mxu0
        %v916 = vadd.f32 %v651, %v915
        %v917 = vpop.f32.mrb[0].mxu0
        %918 = vmatprep.mubr.f32.mxu0 0.0
        %919 = vmatmul.mubr.f32.gmra.mrb[0].mxu0 %v718
        %v920 = vpop.f32.mrb[0].mxu0
        %v921 = vadd.f32 %v651, %v920
        %v922 = vpop.f32.mrb[0].mxu0
        %923 = vmatprep.mubr.f32.mxu0 0.0
        %924 = vmatmul.mubr.f32.gmra.mrb[0].mxu0 %v720
        %v925 = vpop.f32.mrb[0].mxu0
        %v926 = vadd.f32 %v651, %v925
        %v927 = vpop.f32.mrb[0].mxu0
        %928 = vmatprep.mubr.f32.mxu0 0.0
        %929 = vmatmul.mubr.f32.gmra.mrb[0].mxu0 %v722
        %v930 = vpop.f32.mrb[0].mxu0
        %v931 = vadd.f32 %v651, %v930
        %v932 = vpop.f32.mrb[0].mxu0
        %933 = vmatprep.mubr.f32.mxu0 0.0
        %934 = vmatmul.mubr.f32.gmra.mrb[0].mxu0 %v724
        %v935 = vpop.f32.mrb[0].mxu0
        %v936 = vadd.f32 %v651, %v935
        %v937 = vpop.f32.mrb[0].mxu0
        %938 = vmatprep.mubr.f32.mxu0 0.0
        %939 = vmatmul.mubr.f32.gmra.mrb[0].mxu0 %v726
        %v940 = vpop.f32.mrb[0].mxu0
        %v941 = vadd.f32 %v651, %v940
        %v942 = vpop.f32.mrb[0].mxu0
        %943 = vmatprep.mubr.f32.mxu0 0.0
        %944 = vmatmul.mubr.f32.gmra.mrb[0].mxu0 %v728
        %v945 = vpop.f32.mrb[0].mxu0
        %v946 = vadd.f32 %v651, %v945
        %v947 = vpop.f32.mrb[0].mxu0
        %948 = vmatprep.mubr.f32.mxu0 0.0
        %949 = vmatmul.mubr.f32.gmra.mrb[0].mxu0 %v730
        %v950 = vpop.f32.mrb[0].mxu0
        %v951 = vadd.f32 %v651, %v950
        %v952 = vpop.f32.mrb[0].mxu0
        %953 = vmatprep.mubr.f32.mxu0 0.0
        %954 = vmatmul.mubr.f32.gmra.mrb[0].mxu0 %v732
        %v955 = vpop.f32.mrb[0].mxu0
        %v956 = vadd.f32 %v651, %v955
        %v957 = vpop.f32.mrb[0].mxu0
        %958 = vdwg.mxu0
        %v959 = vmax.f32 %v801, 0.0
        %v960 = vmax.f32 %v806, 0.0
        %v961 = vmax.f32 %v811, 0.0
        %v962 = vmax.f32 %v816, 0.0
        %v963 = vmax.f32 %v821, 0.0
        %v964 = vmax.f32 %v826, 0.0
        %v965 = vmax.f32 %v831, 0.0
        %v966 = vmax.f32 %v836, 0.0
        %v967 = vmax.f32 %v841, 0.0
        %v968 = vmax.f32 %v846, 0.0
        %v969 = vmax.f32 %v851, 0.0
        %v970 = vmax.f32 %v856, 0.0
        %v971 = vmax.f32 %v861, 0.0
        %v972 = vmax.f32 %v866, 0.0
        %v973 = vmax.f32 %v871, 0.0
        %v974 = vmax.f32 %v876, 0.0
        %v975 = vmax.f32 %v881, 0.0
        %v976 = vmax.f32 %v886, 0.0
        %v977 = vmax.f32 %v891, 0.0
        %v978 = vmax.f32 %v896, 0.0
        %v979 = vmax.f32 %v901, 0.0
        %v980 = vmax.f32 %v906, 0.0
        %v981 = vmax.f32 %v911, 0.0
        %v982 = vmax.f32 %v916, 0.0
        %v983 = vmax.f32 %v921, 0.0
        %v984 = vmax.f32 %v926, 0.0
        %v985 = vmax.f32 %v931, 0.0
        %v986 = vmax.f32 %v936, 0.0
        %v987 = vmax.f32 %v941, 0.0
        %v988 = vmax.f32 %v946, 0.0
        %v989 = vmax.f32 %v951, 0.0
        %v990 = vmax.f32 %v956, 0.0
        %v991 = vld [vmem:[%s5] sm:$0x7]
        %v992 = vld [vmem:[%s5 + $0x4] sm:$0x7]
        %v993 = vld [vmem:[%s5 + $0x8] sm:$0x7]
        %v994 = vld [vmem:[%s6] sm:$0x1]
        %v1003 = vrot.slane %v983, 7
        %v1004 = vrot.slane %v984, 7
        %v1005 = vrot.slane %v985, 7
        %v1006 = vrot.slane %v986, 7
        %v1007 = vrot.slane %v987, 7
        %v1008 = vrot.slane %v988, 7
        %v1009 = vrot.slane %v989, 7
        %v1010 = vrot.slane %v990, 7
        %v1019 = vsel %vm418, 0.0, %v1003
        %v1020 = vsel %vm418, 0.0, %v1004
        %v1021 = vsel %vm418, 0.0, %v1005
        %v1022 = vsel %vm418, 0.0, %v1006
        %v1023 = vsel %vm418, 0.0, %v1007
        %v1024 = vsel %vm418, 0.0, %v1008
        %v1025 = vsel %vm418, 0.0, %v1009
        %v1026 = vsel %vm418, 0.0, %v1010
        %v1027 = vlaneseq
        %v1028 = vshrl.u32 %v1027, 7
        %v1029 = vsub.s32 0, %v1028
        %v1030 = vrot.slane %v991, %v1029
        %v1031 = vmul.f32 %v1030, 0.0
        %v1032 = vmul.f32 %v1019, %v1030
        %v1033 = vmul.f32 %v1020, %v1030
        %v1034 = vmul.f32 %v1021, %v1030
        %v1035 = vmul.f32 %v1022, %v1030
        %v1036 = vmul.f32 %v1023, %v1030
        %v1037 = vmul.f32 %v1024, %v1030
        %v1038 = vmul.f32 %v1025, %v1030
        %v1039 = vlaneseq
        %v1040 = vshrl.u32 %v1039, 7
        %v1041 = vsub.s32 1, %v1040
        %v1042 = vrot.slane %v991, %v1041
        %v1043 = vmul.f32 %v1042, 0.0
        %v1044 = vmul.f32 %v975, %v1042
        %v1045 = vmul.f32 %v976, %v1042
        %v1046 = vmul.f32 %v977, %v1042
        %v1047 = vmul.f32 %v978, %v1042
        %v1048 = vmul.f32 %v979, %v1042
        %v1049 = vmul.f32 %v980, %v1042
        %v1050 = vmul.f32 %v981, %v1042
        %v1051 = vadd.f32 %v1031, %v1043
        %v1052 = vadd.f32 %v1032, %v1044
        %v1053 = vadd.f32 %v1033, %v1045
        %v1054 = vadd.f32 %v1034, %v1046
        %v1055 = vadd.f32 %v1035, %v1047
        %v1056 = vadd.f32 %v1036, %v1048
        %v1057 = vadd.f32 %v1037, %v1049
        %v1058 = vadd.f32 %v1038, %v1050
        %v1059 = vlaneseq
        %v1060 = vshrl.u32 %v1059, 7
        %v1061 = vsub.s32 2, %v1060
        %v1062 = vrot.slane %v991, %v1061
        %v1063 = vmul.f32 %v1062, 0.0
        %v1064 = vmul.f32 %v983, %v1062
        %v1065 = vmul.f32 %v984, %v1062
        %v1066 = vmul.f32 %v985, %v1062
        %v1067 = vmul.f32 %v986, %v1062
        %v1068 = vmul.f32 %v987, %v1062
        %v1069 = vmul.f32 %v988, %v1062
        %v1070 = vmul.f32 %v989, %v1062
        %v1071 = vadd.f32 %v1051, %v1063
        %v1072 = vadd.f32 %v1052, %v1064
        %v1073 = vadd.f32 %v1053, %v1065
        %v1074 = vadd.f32 %v1054, %v1066
        %v1075 = vadd.f32 %v1055, %v1067
        %v1076 = vadd.f32 %v1056, %v1068
        %v1077 = vadd.f32 %v1057, %v1069
        %v1078 = vadd.f32 %v1058, %v1070
        %v1087 = vrot.slane %v967, 7
        %v1088 = vrot.slane %v968, 7
        %v1089 = vrot.slane %v969, 7
        %v1090 = vrot.slane %v970, 7
        %v1091 = vrot.slane %v971, 7
        %v1092 = vrot.slane %v972, 7
        %v1093 = vrot.slane %v973, 7
        %v1094 = vrot.slane %v974, 7
        %v1103 = vsel %vm418, 0.0, %v1087
        %v1104 = vsel %vm418, 0.0, %v1088
        %v1105 = vsel %vm418, 0.0, %v1089
        %v1106 = vsel %vm418, 0.0, %v1090
        %v1107 = vsel %vm418, 0.0, %v1091
        %v1108 = vsel %vm418, 0.0, %v1092
        %v1109 = vsel %vm418, 0.0, %v1093
        %v1110 = vsel %vm418, 0.0, %v1094
        %v1111 = vlaneseq
        %v1112 = vshrl.u32 %v1111, 7
        %v1113 = vsub.s32 0, %v1112
        %v1114 = vrot.slane %v992, %v1113
        %v1115 = vmul.f32 %v1103, %v1114
        %v1116 = vmul.f32 %v1104, %v1114
        %v1117 = vmul.f32 %v1105, %v1114
        %v1118 = vmul.f32 %v1106, %v1114
        %v1119 = vmul.f32 %v1107, %v1114
        %v1120 = vmul.f32 %v1108, %v1114
        %v1121 = vmul.f32 %v1109, %v1114
        %v1122 = vmul.f32 %v1110, %v1114
        %v1123 = vadd.f32 %v1071, %v1115
        %v1124 = vadd.f32 %v1072, %v1116
        %v1125 = vadd.f32 %v1073, %v1117
        %v1126 = vadd.f32 %v1074, %v1118
        %v1127 = vadd.f32 %v1075, %v1119
        %v1128 = vadd.f32 %v1076, %v1120
        %v1129 = vadd.f32 %v1077, %v1121
        %v1130 = vadd.f32 %v1078, %v1122
        %v1131 = vlaneseq
        %v1132 = vshrl.u32 %v1131, 7
        %v1133 = vsub.s32 1, %v1132
        %v1134 = vrot.slane %v992, %v1133
        %v1135 = vmul.f32 %v959, %v1134
        %v1136 = vmul.f32 %v960, %v1134
        %v1137 = vmul.f32 %v961, %v1134
        %v1138 = vmul.f32 %v962, %v1134
        %v1139 = vmul.f32 %v963, %v1134
        %v1140 = vmul.f32 %v964, %v1134
        %v1141 = vmul.f32 %v965, %v1134
        %v1142 = vmul.f32 %v966, %v1134
        %v1143 = vadd.f32 %v1123, %v1135
        %v1144 = vadd.f32 %v1124, %v1136
        %v1145 = vadd.f32 %v1125, %v1137
        %v1146 = vadd.f32 %v1126, %v1138
        %v1147 = vadd.f32 %v1127, %v1139
        %v1148 = vadd.f32 %v1128, %v1140
        %v1149 = vadd.f32 %v1129, %v1141
        %v1150 = vadd.f32 %v1130, %v1142
        %v1151 = vlaneseq
        %v1152 = vshrl.u32 %v1151, 7
        %v1153 = vsub.s32 2, %v1152
        %v1154 = vrot.slane %v992, %v1153
        %v1155 = vmul.f32 %v967, %v1154
        %v1156 = vmul.f32 %v968, %v1154
        %v1157 = vmul.f32 %v969, %v1154
        %v1158 = vmul.f32 %v970, %v1154
        %v1159 = vmul.f32 %v971, %v1154
        %v1160 = vmul.f32 %v972, %v1154
        %v1161 = vmul.f32 %v973, %v1154
        %v1162 = vmul.f32 %v974, %v1154
        %v1163 = vadd.f32 %v1143, %v1155
        %v1164 = vadd.f32 %v1144, %v1156
        %v1165 = vadd.f32 %v1145, %v1157
        %v1166 = vadd.f32 %v1146, %v1158
        %v1167 = vadd.f32 %v1147, %v1159
        %v1168 = vadd.f32 %v1148, %v1160
        %v1169 = vadd.f32 %v1149, %v1161
        %v1170 = vadd.f32 %v1150, %v1162
        %v1171 = vlaneseq
        %v1172 = vshrl.u32 %v1171, 7
        %v1173 = vsub.s32 0, %v1172
        %v1174 = vrot.slane %v993, %v1173
        %v1175 = vmul.f32 %v1019, %v1174
        %v1176 = vmul.f32 %v1020, %v1174
        %v1177 = vmul.f32 %v1021, %v1174
        %v1178 = vmul.f32 %v1022, %v1174
        %v1179 = vmul.f32 %v1023, %v1174
        %v1180 = vmul.f32 %v1024, %v1174
        %v1181 = vmul.f32 %v1025, %v1174
        %v1182 = vmul.f32 %v1026, %v1174
        %v1183 = vadd.f32 %v1163, %v1175
        %v1184 = vadd.f32 %v1164, %v1176
        %v1185 = vadd.f32 %v1165, %v1177
        %v1186 = vadd.f32 %v1166, %v1178
        %v1187 = vadd.f32 %v1167, %v1179
        %v1188 = vadd.f32 %v1168, %v1180
        %v1189 = vadd.f32 %v1169, %v1181
        %v1190 = vadd.f32 %v1170, %v1182
        %v1191 = vlaneseq
        %v1192 = vshrl.u32 %v1191, 7
        %v1193 = vsub.s32 1, %v1192
        %v1194 = vrot.slane %v993, %v1193
        %v1195 = vmul.f32 %v975, %v1194
        %v1196 = vmul.f32 %v976, %v1194
        %v1197 = vmul.f32 %v977, %v1194
        %v1198 = vmul.f32 %v978, %v1194
        %v1199 = vmul.f32 %v979, %v1194
        %v1200 = vmul.f32 %v980, %v1194
        %v1201 = vmul.f32 %v981, %v1194
        %v1202 = vmul.f32 %v982, %v1194
        %v1203 = vadd.f32 %v1183, %v1195
        %v1204 = vadd.f32 %v1184, %v1196
        %v1205 = vadd.f32 %v1185, %v1197
        %v1206 = vadd.f32 %v1186, %v1198
        %v1207 = vadd.f32 %v1187, %v1199
        %v1208 = vadd.f32 %v1188, %v1200
        %v1209 = vadd.f32 %v1189, %v1201
        %v1210 = vadd.f32 %v1190, %v1202
        %v1211 = vlaneseq
        %v1212 = vshrl.u32 %v1211, 7
        %v1213 = vsub.s32 2, %v1212
        %v1214 = vrot.slane %v993, %v1213
        %v1215 = vmul.f32 %v983, %v1214
        %v1216 = vmul.f32 %v984, %v1214
        %v1217 = vmul.f32 %v985, %v1214
        %v1218 = vmul.f32 %v986, %v1214
        %v1219 = vmul.f32 %v987, %v1214
        %v1220 = vmul.f32 %v988, %v1214
        %v1221 = vmul.f32 %v989, %v1214
        %v1222 = vmul.f32 %v990, %v1214
        %v1223 = vadd.f32 %v1203, %v1215
        %v1224 = vadd.f32 %v1204, %v1216
        %v1225 = vadd.f32 %v1205, %v1217
        %v1226 = vadd.f32 %v1206, %v1218
        %v1227 = vadd.f32 %v1207, %v1219
        %v1228 = vadd.f32 %v1208, %v1220
        %v1229 = vadd.f32 %v1209, %v1221
        %v1230 = vadd.f32 %v1210, %v1222
        %v1232 = vlaneseq
        %v1233 = vshrl.u32 %v1232, 7
        %v1234 = vsub.s32 0, %v1233
        %v1235 = vrot.slane %v994, %v1234
        %v1237 = vadd.f32 %v1223, %v1235
        %v1238 = vadd.f32 %v1224, %v1235
        %v1239 = vadd.f32 %v1225, %v1235
        %v1240 = vadd.f32 %v1226, %v1235
        %v1241 = vadd.f32 %v1227, %v1235
        %v1242 = vadd.f32 %v1228, %v1235
        %v1243 = vadd.f32 %v1229, %v1235
        %v1244 = vadd.f32 %v1230, %v1235
        %v1245 = vld [vmem:[%s7] sm:$0xff]
        %v1246 = vld [vmem:[%s8] sm:$0xff]
        %v1248 = vsel %vm653, %v1237, 0
        %v1251 = vsel %vm653, %v1238, 0
        %v1254 = vsel %vm653, %v1239, 0
        %v1257 = vsel %vm653, %v1240, 0
        %v1260 = vsel %vm653, %v1241, 0
        %v1263 = vsel %vm653, %v1242, 0
        %v1266 = vsel %vm653, %v1243, 0
        %v1269 = vsel %vm653, %v1244, 0
        %1271 = vmatprep.subr.mxu0 0.0
        %1272 = vmatpush1.msra.mxu0 %v1246
        %1273 = vmatprep.subr.mxu0 0.0
        %1274 = vmatpush1.msra.mxu0 0.0
        %1275 = vmatprep.subr.mxu0 0.0
        %1276 = vmatpush1.msra.mxu0 0.0
        %1277 = vmatprep.subr.mxu0 0.0
        %1278 = vmatpush1.msra.mxu0 0.0
        %1279 = vmatprep.subr.mxu0 0.0
        %1280 = vmatpush1.msra.mxu0 0.0
        %1281 = vmatprep.subr.mxu0 0.0
        %1282 = vmatpush1.msra.mxu0 0.0
        %1283 = vmatprep.subr.mxu0 0.0
        %1284 = vmatpush1.msra.mxu0 0.0
        %1285 = vmatprep.subr.mxu0 0.0
        %1286 = vmatpush1.msra.mxu0 0.0
        %1287 = vmatprep.subr.mxu0 0.0
        %1288 = vmatpush1.msra.mxu0 0.0
        %1289 = vmatprep.subr.mxu0 0.0
        %1290 = vmatpush1.msra.mxu0 0.0
        %1291 = vmatprep.subr.mxu0 0.0
        %1292 = vmatpush1.msra.mxu0 0.0
        %1293 = vmatprep.subr.mxu0 0.0
        %1294 = vmatpush1.msra.mxu0 0.0
        %1295 = vmatprep.subr.mxu0 0.0
        %1296 = vmatpush1.msra.mxu0 0.0
        %1297 = vmatprep.subr.mxu0 0.0
        %1298 = vmatpush1.msra.mxu0 0.0
        %1299 = vmatprep.subr.mxu0 0.0
        %1300 = vmatpush1.msra.mxu0 0.0
        %1301 = vmatprep.subr.mxu0 0.0
        %1302 = vmatpush1.msra.mxu0 0.0
        %1303 = vmatprep.subr.mxu0 0.0
        %1304 = vmatpush1.msra.mxu0 0.0
        %1305 = vmatprep.subr.mxu0 0.0
        %1306 = vmatpush1.msra.mxu0 0.0
        %1307 = vmatprep.subr.mxu0 0.0
        %1308 = vmatpush1.msra.mxu0 0.0
        %1309 = vmatprep.subr.mxu0 0.0
        %1310 = vmatpush1.msra.mxu0 0.0
        %1311 = vmatprep.subr.mxu0 0.0
        %1312 = vmatpush1.msra.mxu0 0.0
        %1313 = vmatprep.subr.mxu0 0.0
        %1314 = vmatpush1.msra.mxu0 0.0
        %1315 = vmatprep.subr.mxu0 0.0
        %1316 = vmatpush1.msra.mxu0 0.0
        %1317 = vmatprep.subr.mxu0 0.0
        %1318 = vmatpush1.msra.mxu0 0.0
        %1319 = vmatprep.subr.mxu0 0.0
        %1320 = vmatpush1.msra.mxu0 0.0
        %1321 = vmatprep.subr.mxu0 0.0
        %1322 = vmatpush1.msra.mxu0 0.0
        %1323 = vmatprep.subr.mxu0 0.0
        %1324 = vmatpush1.msra.mxu0 0.0
        %1325 = vmatprep.subr.mxu0 0.0
        %1326 = vmatpush1.msra.mxu0 0.0
        %1327 = vmatprep.subr.mxu0 0.0
        %1328 = vmatpush1.msra.mxu0 0.0
        %1329 = vmatprep.subr.mxu0 0.0
        %1330 = vmatpush1.msra.mxu0 0.0
        %1331 = vmatprep.subr.mxu0 0.0
        %1332 = vmatpush1.msra.mxu0 0.0
        %1333 = vmatprep.subr.mxu0 0.0
        %1334 = vmatpush1.msra.mxu0 0.0
        %1335 = vmatprep.mubr.f32.mxu0 0.0
        %1336 = vmatmul.mubr.f32.gmra.mrb[0].mxu0 %v1248
        %v1337 = vpop.f32.mrb[0].mxu0
        %v1338 = vadd.f32 0.0, %v1337
        %v1339 = vpop.f32.mrb[0].mxu0
        %1340 = vmatprep.mubr.f32.mxu0 0.0
        %1341 = vmatmul.mubr.f32.gmra.mrb[0].mxu0 %v1251
        %v1342 = vpop.f32.mrb[0].mxu0
        %v1343 = vadd.f32 0.0, %v1342
        %v1344 = vpop.f32.mrb[0].mxu0
        %1345 = vmatprep.mubr.f32.mxu0 0.0
        %1346 = vmatmul.mubr.f32.gmra.mrb[0].mxu0 %v1254
        %v1347 = vpop.f32.mrb[0].mxu0
        %v1348 = vadd.f32 0.0, %v1347
        %v1349 = vpop.f32.mrb[0].mxu0
        %1350 = vmatprep.mubr.f32.mxu0 0.0
        %1351 = vmatmul.mubr.f32.gmra.mrb[0].mxu0 %v1257
        %v1352 = vpop.f32.mrb[0].mxu0
        %v1353 = vadd.f32 0.0, %v1352
        %v1354 = vpop.f32.mrb[0].mxu0
        %1355 = vmatprep.mubr.f32.mxu0 0.0
        %1356 = vmatmul.mubr.f32.gmra.mrb[0].mxu0 %v1260
        %v1357 = vpop.f32.mrb[0].mxu0
        %v1358 = vadd.f32 0.0, %v1357
        %v1359 = vpop.f32.mrb[0].mxu0
        %1360 = vmatprep.mubr.f32.mxu0 0.0
        %1361 = vmatmul.mubr.f32.gmra.mrb[0].mxu0 %v1263
        %v1362 = vpop.f32.mrb[0].mxu0
        %v1363 = vadd.f32 0.0, %v1362
        %v1364 = vpop.f32.mrb[0].mxu0
        %1365 = vmatprep.mubr.f32.mxu0 0.0
        %1366 = vmatmul.mubr.f32.gmra.mrb[0].mxu0 %v1266
        %v1367 = vpop.f32.mrb[0].mxu0
        %v1368 = vadd.f32 0.0, %v1367
        %v1369 = vpop.f32.mrb[0].mxu0
        %1370 = vmatprep.mubr.f32.mxu0 0.0
        %1371 = vmatmul.mubr.f32.gmra.mrb[0].mxu0 %v1269
        %v1372 = vpop.f32.mrb[0].mxu0
        %v1373 = vadd.f32 0.0, %v1372
        %v1374 = vpop.f32.mrb[0].mxu0
        %1375 = vdwg.mxu0
        %v1377 = vsel %vm653, %v637, 0
        %v1380 = vsel %vm653, %v638, 0
        %v1383 = vsel %vm653, %v639, 0
        %v1386 = vsel %vm653, %v640, 0
        %v1389 = vsel %vm653, %v641, 0
        %v1392 = vsel %vm653, %v642, 0
        %v1395 = vsel %vm653, %v643, 0
        %v1398 = vsel %vm653, %v644, 0
        %1400 = vmatprep.subr.mxu0 0.0
        %1401 = vmatpush1.msra.mxu0 %v1245
        %1402 = vmatprep.subr.mxu0 0.0
        %1403 = vmatpush1.msra.mxu0 0.0
        %1404 = vmatprep.subr.mxu0 0.0
        %1405 = vmatpush1.msra.mxu0 0.0
        %1406 = vmatprep.subr.mxu0 0.0
        %1407 = vmatpush1.msra.mxu0 0.0
        %1408 = vmatprep.subr.mxu0 0.0
        %1409 = vmatpush1.msra.mxu0 0.0
        %1410 = vmatprep.subr.mxu0 0.0
        %1411 = vmatpush1.msra.mxu0 0.0
        %1412 = vmatprep.subr.mxu0 0.0
        %1413 = vmatpush1.msra.mxu0 0.0
        %1414 = vmatprep.subr.mxu0 0.0
        %1415 = vmatpush1.msra.mxu0 0.0
        %1416 = vmatprep.subr.mxu0 0.0
        %1417 = vmatpush1.msra.mxu0 0.0
        %1418 = vmatprep.subr.mxu0 0.0
        %1419 = vmatpush1.msra.mxu0 0.0
        %1420 = vmatprep.subr.mxu0 0.0
        %1421 = vmatpush1.msra.mxu0 0.0
        %1422 = vmatprep.subr.mxu0 0.0
        %1423 = vmatpush1.msra.mxu0 0.0
        %1424 = vmatprep.subr.mxu0 0.0
        %1425 = vmatpush1.msra.mxu0 0.0
        %1426 = vmatprep.subr.mxu0 0.0
        %1427 = vmatpush1.msra.mxu0 0.0
        %1428 = vmatprep.subr.mxu0 0.0
        %1429 = vmatpush1.msra.mxu0 0.0
        %1430 = vmatprep.subr.mxu0 0.0
        %1431 = vmatpush1.msra.mxu0 0.0
        %1432 = vmatprep.subr.mxu0 0.0
        %1433 = vmatpush1.msra.mxu0 0.0
        %1434 = vmatprep.subr.mxu0 0.0
        %1435 = vmatpush1.msra.mxu0 0.0
        %1436 = vmatprep.subr.mxu0 0.0
        %1437 = vmatpush1.msra.mxu0 0.0
        %1438 = vmatprep.subr.mxu0 0.0
        %1439 = vmatpush1.msra.mxu0 0.0
        %1440 = vmatprep.subr.mxu0 0.0
        %1441 = vmatpush1.msra.mxu0 0.0
        %1442 = vmatprep.subr.mxu0 0.0
        %1443 = vmatpush1.msra.mxu0 0.0
        %1444 = vmatprep.subr.mxu0 0.0
        %1445 = vmatpush1.msra.mxu0 0.0
        %1446 = vmatprep.subr.mxu0 0.0
        %1447 = vmatpush1.msra.mxu0 0.0
        %1448 = vmatprep.subr.mxu0 0.0
        %1449 = vmatpush1.msra.mxu0 0.0
        %1450 = vmatprep.subr.mxu0 0.0
        %1451 = vmatpush1.msra.mxu0 0.0
        %1452 = vmatprep.subr.mxu0 0.0
        %1453 = vmatpush1.msra.mxu0 0.0
        %1454 = vmatprep.subr.mxu0 0.0
        %1455 = vmatpush1.msra.mxu0 0.0
        %1456 = vmatprep.subr.mxu0 0.0
        %1457 = vmatpush1.msra.mxu0 0.0
        %1458 = vmatprep.subr.mxu0 0.0
        %1459 = vmatpush1.msra.mxu0 0.0
        %1460 = vmatprep.subr.mxu0 0.0
        %1461 = vmatpush1.msra.mxu0 0.0
        %1462 = vmatprep.subr.mxu0 0.0
        %1463 = vmatpush1.msra.mxu0 0.0
        %1464 = vmatprep.mubr.f32.mxu0 0.0
        %1465 = vmatmul.mubr.f32.gmra.mrb[0].mxu0 %v1377
        %v1466 = vpop.f32.mrb[0].mxu0
        %v1467 = vadd.f32 %v1338, %v1466
        %v1468 = vpop.f32.mrb[0].mxu0
        %1469 = vmatprep.mubr.f32.mxu0 0.0
        %1470 = vmatmul.mubr.f32.gmra.mrb[0].mxu0 %v1380
        %v1471 = vpop.f32.mrb[0].mxu0
        %v1472 = vadd.f32 %v1343, %v1471
        %v1473 = vpop.f32.mrb[0].mxu0
        %1474 = vmatprep.mubr.f32.mxu0 0.0
        %1475 = vmatmul.mubr.f32.gmra.mrb[0].mxu0 %v1383
        %v1476 = vpop.f32.mrb[0].mxu0
        %v1477 = vadd.f32 %v1348, %v1476
        %v1478 = vpop.f32.mrb[0].mxu0
        %1479 = vmatprep.mubr.f32.mxu0 0.0
        %1480 = vmatmul.mubr.f32.gmra.mrb[0].mxu0 %v1386
        %v1481 = vpop.f32.mrb[0].mxu0
        %v1482 = vadd.f32 %v1353, %v1481
        %v1483 = vpop.f32.mrb[0].mxu0
        %1484 = vmatprep.mubr.f32.mxu0 0.0
        %1485 = vmatmul.mubr.f32.gmra.mrb[0].mxu0 %v1389
        %v1486 = vpop.f32.mrb[0].mxu0
        %v1487 = vadd.f32 %v1358, %v1486
        %v1488 = vpop.f32.mrb[0].mxu0
        %1489 = vmatprep.mubr.f32.mxu0 0.0
        %1490 = vmatmul.mubr.f32.gmra.mrb[0].mxu0 %v1392
        %v1491 = vpop.f32.mrb[0].mxu0
        %v1492 = vadd.f32 %v1363, %v1491
        %v1493 = vpop.f32.mrb[0].mxu0
        %1494 = vmatprep.mubr.f32.mxu0 0.0
        %1495 = vmatmul.mubr.f32.gmra.mrb[0].mxu0 %v1395
        %v1496 = vpop.f32.mrb[0].mxu0
        %v1497 = vadd.f32 %v1368, %v1496
        %v1498 = vpop.f32.mrb[0].mxu0
        %1499 = vmatprep.mubr.f32.mxu0 0.0
        %1500 = vmatmul.mubr.f32.gmra.mrb[0].mxu0 %v1398
        %v1501 = vpop.f32.mrb[0].mxu0
        %v1502 = vadd.f32 %v1373, %v1501
        %v1503 = vpop.f32.mrb[0].mxu0
        %1504 = vdwg.mxu0
        %v1505 = vld [vmem:[%s9] sm:$0x1]
        %v1507 = vlaneseq
        %v1508 = vshrl.u32 %v1507, 7
        %v1509 = vsub.s32 0, %v1508
        %v1510 = vrot.slane %v1505, %v1509
        %v1512 = vadd.f32 %v1467, %v1510
        %v1513 = vadd.f32 %v1472, %v1510
        %v1514 = vadd.f32 %v1477, %v1510
        %v1515 = vadd.f32 %v1482, %v1510
        %v1516 = vadd.f32 %v1487, %v1510
        %v1517 = vadd.f32 %v1492, %v1510
        %v1518 = vadd.f32 %v1497, %v1510
        %v1519 = vadd.f32 %v1502, %v1510
        %v1520 = vmax.f32 %v1512, 0.0
        %v1521 = vmax.f32 %v1513, 0.0
        %v1522 = vmax.f32 %v1514, 0.0
        %v1523 = vmax.f32 %v1515, 0.0
        %v1524 = vmax.f32 %v1516, 0.0
        %v1525 = vmax.f32 %v1517, 0.0
        %v1526 = vmax.f32 %v1518, 0.0
        %v1527 = vmax.f32 %v1519, 0.0
        %vm1528 = vcmask 130048
        %1529 = vst.msk [vmem:[%s352] sm:$0xff] %vm1528, %v1520
        %1530 = vst.msk [vmem:[%s352 + $0x8] sm:$0xff] %vm1528, %v1521
        %1531 = vst.msk [vmem:[%s352 + $0x10] sm:$0xff] %vm1528, %v1522
        %1532 = vst.msk [vmem:[%s352 + $0x18] sm:$0xff] %vm1528, %v1523
        %1533 = vst.msk [vmem:[%s352 + $0x20] sm:$0xff] %vm1528, %v1524
        %1534 = vst.msk [vmem:[%s352 + $0x28] sm:$0xff] %vm1528, %v1525
        %1535 = vst.msk [vmem:[%s352 + $0x30] sm:$0xff] %vm1528, %v1526
        %1536 = vst.msk [vmem:[%s352 + $0x38] sm:$0xff] %vm1528, %v1527
        %s1537 = sand.u32 %s247, 1
        %s1538 = scalar_lea.sflag [#allocation3], %s1537
        %s1539 = sand.u32 %s247, 1
        %s1540 = smul.addr %s1539, 64
        %s1541 = scalar_lea.vmem [#allocation2], %s1540
        // Predicated region
        $region61: #{downblock_forward.1} parent=59 // pred_check
          %p1542 = pneg %p257
        $region62: #{downblock_forward.1} parent=59 // pred_check_branch
          %1544 = sbr.rel (%p1542) target = $region64
        $region63: #{downblock_forward.1} parent=59 // pred_region
          %s1546 = ssub.s32 1024, 1024
          %1547 = vsyncadd %s1538, %s1546
          %s1548 = smul.addr %s24, 8
          %s1549 = smul.addr %s1548, 128
          %s1550 = scalar_lea.hbm %s10, %s1549
          %s1551 = sshll.u32 %s1541, 4
          %s1552 = int_to_ptr.vmem [resolvable:$true] %s1551
          %1557 = dma.vmem_to_hbm [thread:$0]  %s1552, 1024, %s1550, %s1538, 128, 128, 8
        $region64: #{downblock_forward.1} parent=59 // pred_fallthru
          _
      $region60: #{downblock_forward.1} parent=5 // pred_fallthru
        _
      %p1558 = scmp.le.s32.totalorder 2, %s19
      // Predicated region
      $region65: #{downblock_forward.1} parent=5 // pred_check
        %p1559 = pneg %p1558
      $region66: #{downblock_forward.1} parent=5 // pred_check_branch
        %1561 = sbr.rel (%p1559) target = $region68
      $region67: #{downblock_forward.1} parent=5 // pred_region
        %s1562 = ssub.s32 %s19, 2
        // Predicated region
        $region69: #{downblock_forward.1} parent=67 // pred_check
          %p1563 = pneg %p263
        $region70: #{downblock_forward.1} parent=67 // pred_check_branch
          %1565 = sbr.rel (%p1563) target = $region72
        $region71: #{downblock_forward.1} parent=67 // pred_region
          %s1566 = sand.u32 %s248, 1
          %s1567 = scalar_lea.sflag [#allocation3], %s1566
          %s1568 = sand.u32 %s248, 1
          %s1569 = smul.addr %s1568, 64
          %s1570 = scalar_lea.vmem [#allocation2], %s1569
          %1571 = dma.done %s1567, 1024
        $region72: #{downblock_forward.1} parent=67 // pred_fallthru
          _
      $region68: #{downblock_forward.1} parent=5 // pred_fallthru
        _
    $region6: #{downblock_forward.1} parent=1 // loop_footer
      %s23 = sadd.s32 1, %s19
    $region7: #{downblock_forward.1} parent=1 // loop_footer_branch
      %18 = sbr.rel target = $region3
    $region8: #{downblock_forward.1} parent=1 // loop_exit
      _
    %1572 = vsyncpa [#allocation3], 1
    %s1573 = scalar_lea.sflag [#allocation3], 1
    %1574 = vsyncpa %s1573, 1

</llo_original>
